<compile_context>
chip_gen: v7x
topology: tpu7x:2x2x1
jax: 0.10.0
libtpu: 0.0.40
codegen_flags: <defaults>
</compile_context>

<pallas_src>
import math
import numpy as np
import jax
import jax.numpy as jnp
from jax import lax
from jax.experimental import pallas as pl
from jax.experimental.pallas import tpu as pltpu

# dot_general dimension-numbers helpers:
_NT = (((1,), (1,)), ((), ()))   # q @ k.T without an explicit transpose
_TN = (((0,), (0,)), ((), ()))   # lhs.T @ rhs  (transpose folded into the MXU)


# ----------------------------- Pallas kernel --------------------------------

def _softmax_rows(s):
    """Row softmax with max-shift; EUP approx reciprocal + one Newton step."""
    m = jnp.max(s, axis=-1, keepdims=True)
    p = jnp.exp(s - m)
    denom = jnp.sum(p, axis=-1, keepdims=True)
    r = pl.reciprocal(denom, approx=True)      # EUP slot (essentially free)
    r = r * (2.0 - denom * r)                  # Newton step -> ~full f32 accuracy
    return p * r


def _mha_single_head(h, wq, bq, wk, bk, wv, bv, wo, bo):
    """Single-head nn.MultiheadAttention self-attention on a 2-D (L, E) slab.

    The 1/sqrt(E) score scale is pre-folded into (wq, bq) at pack time.
    Q/K/V are three separate (E, E) matmuls so each result is lane-aligned.
    """
    q = jnp.dot(h, wq, preferred_element_type=jnp.float32) + bq   # (L, E)
    k = jnp.dot(h, wk, preferred_element_type=jnp.float32) + bk   # (L, E)
    v = jnp.dot(h, wv, preferred_element_type=jnp.float32) + bv   # (L, E)
    s = lax.dot_general(q, k, _NT, preferred_element_type=jnp.float32)  # (L, L)
    p = _softmax_rows(s)
    ctx = jnp.dot(p, v, preferred_element_type=jnp.float32)       # (L, E)
    return jnp.dot(ctx, wo, preferred_element_type=jnp.float32) + bo


def _cross_attn_kernel(x_ref,                       # (1, I, S)  pre-transposed input tile
                       wlt_ref, blt_ref,            # time Linear:  (S, Hl), (1, Hl)
                       wq1_ref, bq1_ref, wk1_ref, bk1_ref,
                       wv1_ref, bv1_ref, wo1_ref, bo1_ref,   # time MHA
                       wlv_ref, blv_ref,            # var Linear:   (I, Hs), (1, Hs)
                       wq2_ref, bq2_ref, wk2_ref, bk2_ref,
                       wv2_ref, bv2_ref, wo2_ref, bo2_ref,   # var MHA
                       o_ref):                      # (1, Hl, Hs)
    xb = x_ref[0]                                                          # (I, S)

    # ---- attn_time[0]: Linear(seq_len -> hid_len); x already transposed. ----
    h = jnp.dot(xb, wlt_ref[...], preferred_element_type=jnp.float32) \
        + blt_ref[...]                                                     # (I, Hl)

    # ---- attn_time[1]: single-head self-attention over the variable axis ----
    h = _mha_single_head(h,
                         wq1_ref[...], bq1_ref[...], wk1_ref[...], bk1_ref[...],
                         wv1_ref[...], bv1_ref[...], wo1_ref[...], bo1_ref[...])

    # ---- transpose(1,2) folded into attn_var[0]: Linear(input_size -> hid_size) ----
    g = lax.dot_general(h, wlv_ref[...], _TN,
                        preferred_element_type=jnp.float32) + blv_ref[...]  # (Hl, Hs)

    # ---- attn_var[1]: single-head self-attention over the time axis ----
    out = _mha_single_head(g,
                           wq2_ref[...], bq2_ref[...], wk2_ref[...], bk2_ref[...],
                           wv2_ref[...], bv2_ref[...], wo2_ref[...], bo2_ref[...])

    o_ref[0] = out.astype(o_ref.dtype)                                     # (Hl, Hs)


def cross_attn_pallas(x, packed, *, seq_len, hid_len, input_size, hid_size):
    """x: (B, seq_len, input_size) float32 -> (B, hid_len, hid_size)."""
    B = x.shape[0]
    S, I, Hl, Hs = seq_len, input_size, hid_len, hid_size

    # Fold the outer x.transpose(1,2) into the wrapper (tiny, free at XLA level)
    # so the first Linear inside the kernel is a plain NN matmul.
    x_t = jnp.transpose(x, (0, 2, 1))          # (B, I, S)

    def full2d(w):
        # Whole weight/bias resident; block index never changes -> fetched once.
        return pl.BlockSpec(w.shape, lambda b: (0, 0))

    in_specs = ([pl.BlockSpec((1, I, S), lambda b: (b, 0, 0))]
                + [full2d(w) for w in packed])
    out_spec = pl.BlockSpec((1, Hl, Hs), lambda b: (b, 0, 0))

    return pl.pallas_call(
        _cross_attn_kernel,
        out_shape=jax.ShapeDtypeStruct((B, Hl, Hs), jnp.float32),
        grid=(B,),
        in_specs=in_specs,
        out_specs=out_spec,
        compiler_params=pltpu.CompilerParams(
            dimension_semantics=("parallel",)),    # v7x: batch across both TCs
    )(x_t, *packed)


# ---------------------- parameter init + JAX reference ----------------------

def init_params(key, *, seq_len, hid_len, input_size, hid_size):
    ks = jax.random.split(key, 12)

    def u(k, shape, fan_in):
        bound = 1.0 / math.sqrt(fan_in)
        return jax.random.uniform(k, shape, jnp.float32, -bound, bound)

    # nn.Linear(seq_len, hid_len): weight (Hl, S), bias (Hl,)
    w_lin_t = u(ks[0], (hid_len, seq_len), seq_len)
    b_lin_t = u(ks[1], (hid_len,), seq_len)
    # nn.MultiheadAttention(hid_len, 1): in_proj (3Hl, Hl)+(3Hl,), out_proj (Hl,Hl)+(Hl,)
    w_in_t = u(ks[2], (3 * hid_len, hid_len), hid_len)
    b_in_t = u(ks[3], (3 * hid_len,), hid_len)
    w_out_t = u(ks[4], (hid_len, hid_len), hid_len)
    b_out_t = u(ks[5], (hid_len,), hid_len)
    # nn.Linear(input_size, hid_size)
    w_lin_v = u(ks[6], (hid_size, input_size), input_size)
    b_lin_v = u(ks[7], (hid_size,), input_size)
    # nn.MultiheadAttention(hid_size, 1)
    w_in_v = u(ks[8], (3 * hid_size, hid_size), hid_size)
    b_in_v = u(ks[9], (3 * hid_size,), hid_size)
    w_out_v = u(ks[10], (hid_size, hid_size), hid_size)
    b_out_v = u(ks[11], (hid_size,), hid_size)

    def pack_mha(w_in, b_in, w_out, b_out, E):
        """Split fused QKV, transpose to right-multiply layout, fold 1/sqrt(E)
        into the Q projection (weight + bias)."""
        c = 1.0 / math.sqrt(E)
        wq = (c * w_in[:E]).T
        bq = (c * b_in[:E])[None, :]
        wk = w_in[E:2 * E].T
        bk = b_in[E:2 * E][None, :]
        wv = w_in[2 * E:].T
        bv = b_in[2 * E:][None, :]
        wo = w_out.T
        bo = b_out[None, :]
        return (wq, bq, wk, bk, wv, bv, wo, bo)

    packed = (
        (w_lin_t.T, b_lin_t[None, :])
        + pack_mha(w_in_t, b_in_t, w_out_t, b_out_t, hid_len)
        + (w_lin_v.T, b_lin_v[None, :])
        + pack_mha(w_in_v, b_in_v, w_out_v, b_out_v, hid_size)
    )
    raw = (w_lin_t, b_lin_t, w_in_t, b_in_t, w_out_t, b_out_t,
           w_lin_v, b_lin_v, w_in_v, b_in_v, w_out_v, b_out_v)
    return packed, raw


def reference_forward(x, raw, *, hid_len, hid_size):
    """Pure-JAX reproduction of the PyTorch forward for validation."""
    (w_lin_t, b_lin_t, w_in_t, b_in_t, w_out_t, b_out_t,
     w_lin_v, b_lin_v, w_in_v, b_in_v, w_out_v, b_out_v) = raw

    def mha(h, w_in, b_in, w_out, b_out, E):
        q = h @ w_in[:E].T + b_in[:E]
        k = h @ w_in[E:2 * E].T + b_in[E:2 * E]
        v = h @ w_in[2 * E:].T + b_in[2 * E:]
        s = (q @ jnp.swapaxes(k, -1, -2)) / math.sqrt(E)
        p = jax.nn.softmax(s, axis=-1)
        return (p @ v) @ w_out.T + b_out

    h = jnp.transpose(x, (0, 2, 1))
    h = h @ w_lin_t.T + b_lin_t
    h = mha(h, w_in_t, b_in_t, w_out_t, b_out_t, hid_len)
    h = jnp.transpose(h, (0, 2, 1))
    h = h @ w_lin_v.T + b_lin_v
    return mha(h, w_in_v, b_in_v, w_out_v, b_out_v, hid_size)


# ---------------------------------- main -------------------------------------

if __name__ == "__main__":
    # seq_len != hid_len and input_size != hid_size so both Linears are active
    # (matching the module defaults; the nn.Identity branch is not exercised).
    B, SEQ_LEN, INPUT_SIZE, HID_LEN, HID_SIZE = 2, 16, 8, 32, 32

    key = jax.random.PRNGKey(0)
    kx, kp = jax.random.split(key)
    x = jax.random.normal(kx, (B, SEQ_LEN, INPUT_SIZE), jnp.float32)
    packed, raw = init_params(kp, seq_len=SEQ_LEN, hid_len=HID_LEN,
                              input_size=INPUT_SIZE, hid_size=HID_SIZE)

    out = cross_attn_pallas(x, packed, seq_len=SEQ_LEN, hid_len=HID_LEN,
                            input_size=INPUT_SIZE, hid_size=HID_SIZE)
    out = jax.block_until_ready(out)

    ref = jax.block_until_ready(
        reference_forward(x, raw, hid_len=HID_LEN, hid_size=HID_SIZE))

    assert out.shape == (B, HID_LEN, HID_SIZE), out.shape
    assert np.allclose(np.asarray(out), np.asarray(ref), atol=1e-4, rtol=1e-4), (
        "Pallas output does not match JAX reference")

    print("KERNEL_OK")
</pallas_src>

<mosaic_0001>
module attributes {stable_mosaic.version = 11 : i64} {
  func.func @_cross_attn_kernel(%arg0: i32, %arg1: memref<1x8x16xf32, #tpu.memory_space<vmem>>, %arg2: memref<16x32xf32, #tpu.memory_space<vmem>>, %arg3: memref<1x32xf32, #tpu.memory_space<vmem>>, %arg4: memref<32x32xf32, #tpu.memory_space<vmem>>, %arg5: memref<1x32xf32, #tpu.memory_space<vmem>>, %arg6: memref<32x32xf32, #tpu.memory_space<vmem>>, %arg7: memref<1x32xf32, #tpu.memory_space<vmem>>, %arg8: memref<32x32xf32, #tpu.memory_space<vmem>>, %arg9: memref<1x32xf32, #tpu.memory_space<vmem>>, %arg10: memref<32x32xf32, #tpu.memory_space<vmem>>, %arg11: memref<1x32xf32, #tpu.memory_space<vmem>>, %arg12: memref<8x32xf32, #tpu.memory_space<vmem>>, %arg13: memref<1x32xf32, #tpu.memory_space<vmem>>, %arg14: memref<32x32xf32, #tpu.memory_space<vmem>>, %arg15: memref<1x32xf32, #tpu.memory_space<vmem>>, %arg16: memref<32x32xf32, #tpu.memory_space<vmem>>, %arg17: memref<1x32xf32, #tpu.memory_space<vmem>>, %arg18: memref<32x32xf32, #tpu.memory_space<vmem>>, %arg19: memref<1x32xf32, #tpu.memory_space<vmem>>, %arg20: memref<32x32xf32, #tpu.memory_space<vmem>>, %arg21: memref<1x32xf32, #tpu.memory_space<vmem>>, %arg22: memref<1x32x32xf32, #tpu.memory_space<vmem>>) attributes {dimension_semantics = [#tpu.dimension_semantics<parallel>], iteration_bounds = array<i64: 2>, scalar_prefetch = 0 : i64, scratch_operands = 0 : i64, tpu.core_type = #tpu.core_type<tc>, window_params = [{transform_indices = @transform_0, window_bounds = array<i64: 1, 8, 16>}, {pipeline_mode = #tpu.pipeline_mode<synchronous>, transform_indices = @transform_1, window_bounds = array<i64: 16, 32>}, {pipeline_mode = #tpu.pipeline_mode<synchronous>, transform_indices = @transform_2, window_bounds = array<i64: 1, 32>}, {pipeline_mode = #tpu.pipeline_mode<synchronous>, transform_indices = @transform_3, window_bounds = array<i64: 32, 32>}, {pipeline_mode = #tpu.pipeline_mode<synchronous>, transform_indices = @transform_4, window_bounds = array<i64: 1, 32>}, {pipeline_mode = #tpu.pipeline_mode<synchronous>, transform_indices = @transform_5, window_bounds = array<i64: 32, 32>}, {pipeline_mode = #tpu.pipeline_mode<synchronous>, transform_indices = @transform_6, window_bounds = array<i64: 1, 32>}, {pipeline_mode = #tpu.pipeline_mode<synchronous>, transform_indices = @transform_7, window_bounds = array<i64: 32, 32>}, {pipeline_mode = #tpu.pipeline_mode<synchronous>, transform_indices = @transform_8, window_bounds = array<i64: 1, 32>}, {pipeline_mode = #tpu.pipeline_mode<synchronous>, transform_indices = @transform_9, window_bounds = array<i64: 32, 32>}, {pipeline_mode = #tpu.pipeline_mode<synchronous>, transform_indices = @transform_10, window_bounds = array<i64: 1, 32>}, {pipeline_mode = #tpu.pipeline_mode<synchronous>, transform_indices = @transform_11, window_bounds = array<i64: 8, 32>}, {pipeline_mode = #tpu.pipeline_mode<synchronous>, transform_indices = @transform_12, window_bounds = array<i64: 1, 32>}, {pipeline_mode = #tpu.pipeline_mode<synchronous>, transform_indices = @transform_13, window_bounds = array<i64: 32, 32>}, {pipeline_mode = #tpu.pipeline_mode<synchronous>, transform_indices = @transform_14, window_bounds = array<i64: 1, 32>}, {pipeline_mode = #tpu.pipeline_mode<synchronous>, transform_indices = @transform_15, window_bounds = array<i64: 32, 32>}, {pipeline_mode = #tpu.pipeline_mode<synchronous>, transform_indices = @transform_16, window_bounds = array<i64: 1, 32>}, {pipeline_mode = #tpu.pipeline_mode<synchronous>, transform_indices = @transform_17, window_bounds = array<i64: 32, 32>}, {pipeline_mode = #tpu.pipeline_mode<synchronous>, transform_indices = @transform_18, window_bounds = array<i64: 1, 32>}, {pipeline_mode = #tpu.pipeline_mode<synchronous>, transform_indices = @transform_19, window_bounds = array<i64: 32, 32>}, {pipeline_mode = #tpu.pipeline_mode<synchronous>, transform_indices = @transform_20, window_bounds = array<i64: 1, 32>}, {transform_indices = @transform_21, window_bounds = array<i64: 1, 32, 32>}]} {
    %c0 = arith.constant 0 : index
    %c0_0 = arith.constant 0 : index
    %c0_1 = arith.constant 0 : index
    %0 = vector.load %arg1[%c0, %c0_0, %c0_1] : memref<1x8x16xf32, #tpu.memory_space<vmem>>, vector<1x8x16xf32>
    %1 = vector.shape_cast %0 : vector<1x8x16xf32> to vector<8x16xf32>
    %c0_2 = arith.constant 0 : index
    %c0_3 = arith.constant 0 : index
    %2 = vector.load %arg2[%c0_2, %c0_3] : memref<16x32xf32, #tpu.memory_space<vmem>>, vector<16x32xf32>
    %cst = arith.constant dense<0.000000e+00> : vector<8x32xf32>
    %3 = tpu.matmul %1, %2, %cst {dimension_numbers = #tpu.dot_dimension_numbers<[1], [0], [0], [1], [0, 0, 1, 1], [], []>} : vector<8x16xf32>, vector<16x32xf32>, vector<8x32xf32> -> vector<8x32xf32>
    %c0_4 = arith.constant 0 : index
    %c0_5 = arith.constant 0 : index
    %4 = vector.load %arg3[%c0_4, %c0_5] : memref<1x32xf32, #tpu.memory_space<vmem>>, vector<1x32xf32>
    %5 = vector.broadcast %4 : vector<1x32xf32> to vector<8x32xf32>
    %6 = arith.addf %3, %5 : vector<8x32xf32>
    %c0_6 = arith.constant 0 : index
    %c0_7 = arith.constant 0 : index
    %7 = vector.load %arg4[%c0_6, %c0_7] : memref<32x32xf32, #tpu.memory_space<vmem>>, vector<32x32xf32>
    %c0_8 = arith.constant 0 : index
    %c0_9 = arith.constant 0 : index
    %8 = vector.load %arg5[%c0_8, %c0_9] : memref<1x32xf32, #tpu.memory_space<vmem>>, vector<1x32xf32>
    %c0_10 = arith.constant 0 : index
    %c0_11 = arith.constant 0 : index
    %9 = vector.load %arg6[%c0_10, %c0_11] : memref<32x32xf32, #tpu.memory_space<vmem>>, vector<32x32xf32>
    %c0_12 = arith.constant 0 : index
    %c0_13 = arith.constant 0 : index
    %10 = vector.load %arg7[%c0_12, %c0_13] : memref<1x32xf32, #tpu.memory_space<vmem>>, vector<1x32xf32>
    %c0_14 = arith.constant 0 : index
    %c0_15 = arith.constant 0 : index
    %11 = vector.load %arg8[%c0_14, %c0_15] : memref<32x32xf32, #tpu.memory_space<vmem>>, vector<32x32xf32>
    %c0_16 = arith.constant 0 : index
    %c0_17 = arith.constant 0 : index
    %12 = vector.load %arg9[%c0_16, %c0_17] : memref<1x32xf32, #tpu.memory_space<vmem>>, vector<1x32xf32>
    %c0_18 = arith.constant 0 : index
    %c0_19 = arith.constant 0 : index
    %13 = vector.load %arg10[%c0_18, %c0_19] : memref<32x32xf32, #tpu.memory_space<vmem>>, vector<32x32xf32>
    %c0_20 = arith.constant 0 : index
    %c0_21 = arith.constant 0 : index
    %14 = vector.load %arg11[%c0_20, %c0_21] : memref<1x32xf32, #tpu.memory_space<vmem>>, vector<1x32xf32>
    %cst_22 = arith.constant dense<0.000000e+00> : vector<8x32xf32>
    %15 = tpu.matmul %6, %7, %cst_22 {dimension_numbers = #tpu.dot_dimension_numbers<[1], [0], [0], [1], [0, 0, 1, 1], [], []>} : vector<8x32xf32>, vector<32x32xf32>, vector<8x32xf32> -> vector<8x32xf32>
    %16 = vector.broadcast %8 : vector<1x32xf32> to vector<8x32xf32>
    %17 = arith.addf %15, %16 : vector<8x32xf32>
    %cst_23 = arith.constant dense<0.000000e+00> : vector<8x32xf32>
    %18 = tpu.matmul %6, %9, %cst_23 {dimension_numbers = #tpu.dot_dimension_numbers<[1], [0], [0], [1], [0, 0, 1, 1], [], []>} : vector<8x32xf32>, vector<32x32xf32>, vector<8x32xf32> -> vector<8x32xf32>
    %19 = vector.broadcast %10 : vector<1x32xf32> to vector<8x32xf32>
    %20 = arith.addf %18, %19 : vector<8x32xf32>
    %cst_24 = arith.constant dense<0.000000e+00> : vector<8x32xf32>
    %21 = tpu.matmul %6, %11, %cst_24 {dimension_numbers = #tpu.dot_dimension_numbers<[1], [0], [0], [1], [0, 0, 1, 1], [], []>} : vector<8x32xf32>, vector<32x32xf32>, vector<8x32xf32> -> vector<8x32xf32>
    %22 = vector.broadcast %12 : vector<1x32xf32> to vector<8x32xf32>
    %23 = arith.addf %21, %22 : vector<8x32xf32>
    %cst_25 = arith.constant dense<0.000000e+00> : vector<8x8xf32>
    %24 = tpu.matmul %17, %20, %cst_25 {dimension_numbers = #tpu.dot_dimension_numbers<[1], [1], [0], [0], [0, 0, 1, 0], [], []>} : vector<8x32xf32>, vector<8x32xf32>, vector<8x8xf32> -> vector<8x8xf32>
    %cst_26 = arith.constant dense<0xFF800000> : vector<8xf32>
    %25 = vector.multi_reduction <maximumf>, %24, %cst_26 [1] : vector<8x8xf32> to vector<8xf32>
    %26 = vector.shape_cast %25 : vector<8xf32> to vector<8x1xf32>
    %27 = vector.broadcast %26 : vector<8x1xf32> to vector<8x8xf32>
    %28 = arith.subf %24, %27 : vector<8x8xf32>
    %29 = math.exp %28 : vector<8x8xf32>
    %cst_27 = arith.constant dense<0.000000e+00> : vector<8xf32>
    %30 = vector.multi_reduction <add>, %29, %cst_27 [1] : vector<8x8xf32> to vector<8xf32>
    %31 = vector.shape_cast %30 : vector<8xf32> to vector<8x1xf32>
    %32 = tpu.reciprocal %31 {approx = true} : vector<8x1xf32> -> vector<8x1xf32>
    %33 = arith.mulf %31, %32 : vector<8x1xf32>
    %cst_28 = arith.constant 2.000000e+00 : f32
    %34 = vector.broadcast %cst_28 : f32 to vector<8x1xf32>
    %35 = arith.subf %34, %33 : vector<8x1xf32>
    %36 = arith.mulf %32, %35 : vector<8x1xf32>
    %37 = vector.broadcast %36 : vector<8x1xf32> to vector<8x8xf32>
    %38 = arith.mulf %29, %37 : vector<8x8xf32>
    %cst_29 = arith.constant dense<0.000000e+00> : vector<8x32xf32>
    %39 = tpu.matmul %38, %23, %cst_29 {dimension_numbers = #tpu.dot_dimension_numbers<[1], [0], [0], [1], [0, 0, 1, 1], [], []>} : vector<8x8xf32>, vector<8x32xf32>, vector<8x32xf32> -> vector<8x32xf32>
    %cst_30 = arith.constant dense<0.000000e+00> : vector<8x32xf32>
    %40 = tpu.matmul %39, %13, %cst_30 {dimension_numbers = #tpu.dot_dimension_numbers<[1], [0], [0], [1], [0, 0, 1, 1], [], []>} : vector<8x32xf32>, vector<32x32xf32>, vector<8x32xf32> -> vector<8x32xf32>
    %41 = vector.broadcast %14 : vector<1x32xf32> to vector<8x32xf32>
    %42 = arith.addf %40, %41 : vector<8x32xf32>
    %c0_31 = arith.constant 0 : index
    %c0_32 = arith.constant 0 : index
    %43 = vector.load %arg12[%c0_31, %c0_32] : memref<8x32xf32, #tpu.memory_space<vmem>>, vector<8x32xf32>
    %cst_33 = arith.constant dense<0.000000e+00> : vector<32x32xf32>
    %44 = tpu.matmul %42, %43, %cst_33 {dimension_numbers = #tpu.dot_dimension_numbers<[0], [0], [1], [1], [0, 1, 1, 1], [], []>} : vector<8x32xf32>, vector<8x32xf32>, vector<32x32xf32> -> vector<32x32xf32>
    %c0_34 = arith.constant 0 : index
    %c0_35 = arith.constant 0 : index
    %45 = vector.load %arg13[%c0_34, %c0_35] : memref<1x32xf32, #tpu.memory_space<vmem>>, vector<1x32xf32>
    %46 = vector.broadcast %45 : vector<1x32xf32> to vector<32x32xf32>
    %47 = arith.addf %44, %46 : vector<32x32xf32>
    %c0_36 = arith.constant 0 : index
    %c0_37 = arith.constant 0 : index
    %48 = vector.load %arg14[%c0_36, %c0_37] : memref<32x32xf32, #tpu.memory_space<vmem>>, vector<32x32xf32>
    %c0_38 = arith.constant 0 : index
    %c0_39 = arith.constant 0 : index
    %49 = vector.load %arg15[%c0_38, %c0_39] : memref<1x32xf32, #tpu.memory_space<vmem>>, vector<1x32xf32>
    %c0_40 = arith.constant 0 : index
    %c0_41 = arith.constant 0 : index
    %50 = vector.load %arg16[%c0_40, %c0_41] : memref<32x32xf32, #tpu.memory_space<vmem>>, vector<32x32xf32>
    %c0_42 = arith.constant 0 : index
    %c0_43 = arith.constant 0 : index
    %51 = vector.load %arg17[%c0_42, %c0_43] : memref<1x32xf32, #tpu.memory_space<vmem>>, vector<1x32xf32>
    %c0_44 = arith.constant 0 : index
    %c0_45 = arith.constant 0 : index
    %52 = vector.load %arg18[%c0_44, %c0_45] : memref<32x32xf32, #tpu.memory_space<vmem>>, vector<32x32xf32>
    %c0_46 = arith.constant 0 : index
    %c0_47 = arith.constant 0 : index
    %53 = vector.load %arg19[%c0_46, %c0_47] : memref<1x32xf32, #tpu.memory_space<vmem>>, vector<1x32xf32>
    %c0_48 = arith.constant 0 : index
    %c0_49 = arith.constant 0 : index
    %54 = vector.load %arg20[%c0_48, %c0_49] : memref<32x32xf32, #tpu.memory_space<vmem>>, vector<32x32xf32>
    %c0_50 = arith.constant 0 : index
    %c0_51 = arith.constant 0 : index
    %55 = vector.load %arg21[%c0_50, %c0_51] : memref<1x32xf32, #tpu.memory_space<vmem>>, vector<1x32xf32>
    %cst_52 = arith.constant dense<0.000000e+00> : vector<32x32xf32>
    %56 = tpu.matmul %47, %48, %cst_52 {dimension_numbers = #tpu.dot_dimension_numbers<[1], [0], [0], [1], [0, 0, 1, 1], [], []>} : vector<32x32xf32>, vector<32x32xf32>, vector<32x32xf32> -> vector<32x32xf32>
    %57 = vector.broadcast %49 : vector<1x32xf32> to vector<32x32xf32>
    %58 = arith.addf %56, %57 : vector<32x32xf32>
    %cst_53 = arith.constant dense<0.000000e+00> : vector<32x32xf32>
    %59 = tpu.matmul %47, %50, %cst_53 {dimension_numbers = #tpu.dot_dimension_numbers<[1], [0], [0], [1], [0, 0, 1, 1], [], []>} : vector<32x32xf32>, vector<32x32xf32>, vector<32x32xf32> -> vector<32x32xf32>
    %60 = vector.broadcast %51 : vector<1x32xf32> to vector<32x32xf32>
    %61 = arith.addf %59, %60 : vector<32x32xf32>
    %cst_54 = arith.constant dense<0.000000e+00> : vector<32x32xf32>
    %62 = tpu.matmul %47, %52, %cst_54 {dimension_numbers = #tpu.dot_dimension_numbers<[1], [0], [0], [1], [0, 0, 1, 1], [], []>} : vector<32x32xf32>, vector<32x32xf32>, vector<32x32xf32> -> vector<32x32xf32>
    %63 = vector.broadcast %53 : vector<1x32xf32> to vector<32x32xf32>
    %64 = arith.addf %62, %63 : vector<32x32xf32>
    %cst_55 = arith.constant dense<0.000000e+00> : vector<32x32xf32>
    %65 = tpu.matmul %58, %61, %cst_55 {dimension_numbers = #tpu.dot_dimension_numbers<[1], [1], [0], [0], [0, 0, 1, 0], [], []>} : vector<32x32xf32>, vector<32x32xf32>, vector<32x32xf32> -> vector<32x32xf32>
    %cst_56 = arith.constant dense<0xFF800000> : vector<32xf32>
    %66 = vector.multi_reduction <maximumf>, %65, %cst_56 [1] : vector<32x32xf32> to vector<32xf32>
    %67 = vector.shape_cast %66 : vector<32xf32> to vector<32x1xf32>
    %68 = vector.broadcast %67 : vector<32x1xf32> to vector<32x32xf32>
    %69 = arith.subf %65, %68 : vector<32x32xf32>
    %70 = math.exp %69 : vector<32x32xf32>
    %cst_57 = arith.constant dense<0.000000e+00> : vector<32xf32>
    %71 = vector.multi_reduction <add>, %70, %cst_57 [1] : vector<32x32xf32> to vector<32xf32>
    %72 = vector.shape_cast %71 : vector<32xf32> to vector<32x1xf32>
    %73 = tpu.reciprocal %72 {approx = true} : vector<32x1xf32> -> vector<32x1xf32>
    %74 = arith.mulf %72, %73 : vector<32x1xf32>
    %cst_58 = arith.constant 2.000000e+00 : f32
    %75 = vector.broadcast %cst_58 : f32 to vector<32x1xf32>
    %76 = arith.subf %75, %74 : vector<32x1xf32>
    %77 = arith.mulf %73, %76 : vector<32x1xf32>
    %78 = vector.broadcast %77 : vector<32x1xf32> to vector<32x32xf32>
    %79 = arith.mulf %70, %78 : vector<32x32xf32>
    %cst_59 = arith.constant dense<0.000000e+00> : vector<32x32xf32>
    %80 = tpu.matmul %79, %64, %cst_59 {dimension_numbers = #tpu.dot_dimension_numbers<[1], [0], [0], [1], [0, 0, 1, 1], [], []>} : vector<32x32xf32>, vector<32x32xf32>, vector<32x32xf32> -> vector<32x32xf32>
    %cst_60 = arith.constant dense<0.000000e+00> : vector<32x32xf32>
    %81 = tpu.matmul %80, %54, %cst_60 {dimension_numbers = #tpu.dot_dimension_numbers<[1], [0], [0], [1], [0, 0, 1, 1], [], []>} : vector<32x32xf32>, vector<32x32xf32>, vector<32x32xf32> -> vector<32x32xf32>
    %82 = vector.broadcast %55 : vector<1x32xf32> to vector<32x32xf32>
    %83 = arith.addf %81, %82 : vector<32x32xf32>
    %c0_61 = arith.constant 0 : index
    %c0_62 = arith.constant 0 : index
    %c0_63 = arith.constant 0 : index
    %84 = vector.load %arg22[%c0_61, %c0_62, %c0_63] : memref<1x32x32xf32, #tpu.memory_space<vmem>>, vector<1x32x32xf32>
    %85 = vector.shape_cast %84 : vector<1x32x32xf32> to vector<32x32xf32>
    %86 = vector.shape_cast %83 : vector<32x32xf32> to vector<1x32x32xf32>
    tpu.vector_store %arg22[%c0_61, %c0_62, %c0_63], %86 {strides = array<i32>} : memref<1x32x32xf32, #tpu.memory_space<vmem>>, vector<1x32x32xf32>,
    return
  }
  func.func @transform_0(%arg0: i32) -> (i32, i32, i32) {
    %c0_i32 = arith.constant 0 : i32
    %c0_i32_0 = arith.constant 0 : i32
    %c0_i32_1 = arith.constant 0 : i32
    return %arg0, %c0_i32, %c0_i32_0 : i32, i32, i32
  }
  func.func @transform_1(%arg0: i32) -> (i32, i32) {
    %c0_i32 = arith.constant 0 : i32
    %c0_i32_0 = arith.constant 0 : i32
    %c0_i32_1 = arith.constant 0 : i32
    return %c0_i32, %c0_i32_0 : i32, i32
  }
  func.func @transform_2(%arg0: i32) -> (i32, i32) {
    %c0_i32 = arith.constant 0 : i32
    %c0_i32_0 = arith.constant 0 : i32
    %c0_i32_1 = arith.constant 0 : i32
    return %c0_i32, %c0_i32_0 : i32, i32
  }
  func.func @transform_3(%arg0: i32) -> (i32, i32) {
    %c0_i32 = arith.constant 0 : i32
    %c0_i32_0 = arith.constant 0 : i32
    %c0_i32_1 = arith.constant 0 : i32
    return %c0_i32, %c0_i32_0 : i32, i32
  }
  func.func @transform_4(%arg0: i32) -> (i32, i32) {
    %c0_i32 = arith.constant 0 : i32
    %c0_i32_0 = arith.constant 0 : i32
    %c0_i32_1 = arith.constant 0 : i32
    return %c0_i32, %c0_i32_0 : i32, i32
  }
  func.func @transform_5(%arg0: i32) -> (i32, i32) {
    %c0_i32 = arith.constant 0 : i32
    %c0_i32_0 = arith.constant 0 : i32
    %c0_i32_1 = arith.constant 0 : i32
    return %c0_i32, %c0_i32_0 : i32, i32
  }
  func.func @transform_6(%arg0: i32) -> (i32, i32) {
    %c0_i32 = arith.constant 0 : i32
    %c0_i32_0 = arith.constant 0 : i32
    %c0_i32_1 = arith.constant 0 : i32
    return %c0_i32, %c0_i32_0 : i32, i32
  }
  func.func @transform_7(%arg0: i32) -> (i32, i32) {
    %c0_i32 = arith.constant 0 : i32
    %c0_i32_0 = arith.constant 0 : i32
    %c0_i32_1 = arith.constant 0 : i32
    return %c0_i32, %c0_i32_0 : i32, i32
  }
  func.func @transform_8(%arg0: i32) -> (i32, i32) {
    %c0_i32 = arith.constant 0 : i32
    %c0_i32_0 = arith.constant 0 : i32
    %c0_i32_1 = arith.constant 0 : i32
    return %c0_i32, %c0_i32_0 : i32, i32
  }
  func.func @transform_9(%arg0: i32) -> (i32, i32) {
    %c0_i32 = arith.constant 0 : i32
    %c0_i32_0 = arith.constant 0 : i32
    %c0_i32_1 = arith.constant 0 : i32
    return %c0_i32, %c0_i32_0 : i32, i32
  }
  func.func @transform_10(%arg0: i32) -> (i32, i32) {
    %c0_i32 = arith.constant 0 : i32
    %c0_i32_0 = arith.constant 0 : i32
    %c0_i32_1 = arith.constant 0 : i32
    return %c0_i32, %c0_i32_0 : i32, i32
  }
  func.func @transform_11(%arg0: i32) -> (i32, i32) {
    %c0_i32 = arith.constant 0 : i32
    %c0_i32_0 = arith.constant 0 : i32
    %c0_i32_1 = arith.constant 0 : i32
    return %c0_i32, %c0_i32_0 : i32, i32
  }
  func.func @transform_12(%arg0: i32) -> (i32, i32) {
    %c0_i32 = arith.constant 0 : i32
    %c0_i32_0 = arith.constant 0 : i32
    %c0_i32_1 = arith.constant 0 : i32
    return %c0_i32, %c0_i32_0 : i32, i32
  }
  func.func @transform_13(%arg0: i32) -> (i32, i32) {
    %c0_i32 = arith.constant 0 : i32
    %c0_i32_0 = arith.constant 0 : i32
    %c0_i32_1 = arith.constant 0 : i32
    return %c0_i32, %c0_i32_0 : i32, i32
  }
  func.func @transform_14(%arg0: i32) -> (i32, i32) {
    %c0_i32 = arith.constant 0 : i32
    %c0_i32_0 = arith.constant 0 : i32
    %c0_i32_1 = arith.constant 0 : i32
    return %c0_i32, %c0_i32_0 : i32, i32
  }
  func.func @transform_15(%arg0: i32) -> (i32, i32) {
    %c0_i32 = arith.constant 0 : i32
    %c0_i32_0 = arith.constant 0 : i32
    %c0_i32_1 = arith.constant 0 : i32
    return %c0_i32, %c0_i32_0 : i32, i32
  }
  func.func @transform_16(%arg0: i32) -> (i32, i32) {
    %c0_i32 = arith.constant 0 : i32
    %c0_i32_0 = arith.constant 0 : i32
    %c0_i32_1 = arith.constant 0 : i32
    return %c0_i32, %c0_i32_0 : i32, i32
  }
  func.func @transform_17(%arg0: i32) -> (i32, i32) {
    %c0_i32 = arith.constant 0 : i32
    %c0_i32_0 = arith.constant 0 : i32
    %c0_i32_1 = arith.constant 0 : i32
    return %c0_i32, %c0_i32_0 : i32, i32
  }
  func.func @transform_18(%arg0: i32) -> (i32, i32) {
    %c0_i32 = arith.constant 0 : i32
    %c0_i32_0 = arith.constant 0 : i32
    %c0_i32_1 = arith.constant 0 : i32
    return %c0_i32, %c0_i32_0 : i32, i32
  }
  func.func @transform_19(%arg0: i32) -> (i32, i32) {
    %c0_i32 = arith.constant 0 : i32
    %c0_i32_0 = arith.constant 0 : i32
    %c0_i32_1 = arith.constant 0 : i32
    return %c0_i32, %c0_i32_0 : i32, i32
  }
  func.func @transform_20(%arg0: i32) -> (i32, i32) {
    %c0_i32 = arith.constant 0 : i32
    %c0_i32_0 = arith.constant 0 : i32
    %c0_i32_1 = arith.constant 0 : i32
    return %c0_i32, %c0_i32_0 : i32, i32
  }
  func.func @transform_21(%arg0: i32) -> (i32, i32, i32) {
    %c0_i32 = arith.constant 0 : i32
    %c0_i32_0 = arith.constant 0 : i32
    %c0_i32_1 = arith.constant 0 : i32
    return %arg0, %c0_i32, %c0_i32_0 : i32, i32, i32
  }
}

</mosaic_0001>

<llo_original>
// kernel: tpu_custom_call.1
$region0: #{tpu_custom_call.1}
  #allocation0 [shape = 'u32[]', space=smem, size = 0x4, offset = 0x4, fixed_abs, tag = 'smem constant byte address 0x4 - core index']
  #allocation1 [shape = 'u32[144,128]{1,0:T(1,128)}', space=vmem, size = 0x12000, scoped, tag = 'internal scratch']
  %s0 = inlined_call_operand.hbm [shape: f32[2,8,16], index: 0, kind: input, shape index: {}]
  %s1 = inlined_call_operand.hbm [shape: f32[16,32], index: 1, kind: input, shape index: {}]
  %s2 = inlined_call_operand.hbm [shape: f32[1,32], index: 2, kind: input, shape index: {}]
  %s3 = inlined_call_operand.hbm [shape: f32[32,32], index: 3, kind: input, shape index: {}]
  %s4 = inlined_call_operand.hbm [shape: f32[1,32], index: 4, kind: input, shape index: {}]
  %s5 = inlined_call_operand.hbm [shape: f32[32,32], index: 5, kind: input, shape index: {}]
  %s6 = inlined_call_operand.hbm [shape: f32[1,32], index: 6, kind: input, shape index: {}]
  %s7 = inlined_call_operand.hbm [shape: f32[32,32], index: 7, kind: input, shape index: {}]
  %s8 = inlined_call_operand.hbm [shape: f32[1,32], index: 8, kind: input, shape index: {}]
  %s9 = inlined_call_operand.vmem [shape: f32[32,32], index: 9, kind: input, shape index: {}]
  %s10 = inlined_call_operand.hbm [shape: f32[1,32], index: 10, kind: input, shape index: {}]
  %s11 = inlined_call_operand.hbm [shape: f32[8,32], index: 11, kind: input, shape index: {}]
  %s12 = inlined_call_operand.hbm [shape: f32[1,32], index: 12, kind: input, shape index: {}]
  %s13 = inlined_call_operand.hbm [shape: f32[32,32], index: 13, kind: input, shape index: {}]
  %s14 = inlined_call_operand.hbm [shape: f32[1,32], index: 14, kind: input, shape index: {}]
  %s15 = inlined_call_operand.hbm [shape: f32[32,32], index: 15, kind: input, shape index: {}]
  %s16 = inlined_call_operand.hbm [shape: f32[1,32], index: 16, kind: input, shape index: {}]
  %s17 = inlined_call_operand.vmem [shape: f32[32,32], index: 17, kind: input, shape index: {}]
  %s18 = inlined_call_operand.vmem [shape: f32[1,32], index: 18, kind: input, shape index: {}]
  %s19 = inlined_call_operand.hbm [shape: f32[32,32], index: 19, kind: input, shape index: {}]
  %s20 = inlined_call_operand.vmem [shape: f32[1,32], index: 20, kind: input, shape index: {}]
  %s21 = inlined_call_operand.hbm [shape: f32[2,32,32], index: 21, kind: output, shape index: {}]
  %s22 = sld [smem:[#allocation0]]
  $region185: #{tpu_custom_call.1} parent=0
    _
  %s24 = ssub.s32 1, %s22
  %s25 = scalar_select 0, %s24, %s22
  $region1: #{tpu_custom_call.1} parent=0
    #allocation2 [shape = 'u8[8192]{0}', space=vmem, size = 0x2000, scoped, tag = 'input window, operand 0']
    #allocation3 [shape = 's32[2]{0}', space=sflag, size = 0x8, scoped, tag = 'scoped memory for tpu_custom_call.1']
    #allocation4 [shape = 's32[2]{0}', space=sflag, size = 0x8, scoped, tag = 'scoped memory for tpu_custom_call.1']
    #allocation5 [shape = 'u8[8192]{0}', space=vmem, size = 0x2000, scoped, tag = 'input window, operand 1, single buffered']
    #allocation6 [shape = 's32[1]{0}', space=sflag, size = 0x4, scoped, tag = 'scoped memory for tpu_custom_call.1']
    #allocation7 [shape = 'u8[512]{0}', space=vmem, size = 0x400, scoped, tag = 'input window, operand 2, single buffered']
    #allocation8 [shape = 'u8[16384]{0}', space=vmem, size = 0x4000, scoped, tag = 'input window, operand 3, single buffered']
    #allocation9 [shape = 's32[1]{0}', space=sflag, size = 0x4, scoped, tag = 'scoped memory for tpu_custom_call.1']
    #allocation10 [shape = 'u8[512]{0}', space=vmem, size = 0x400, scoped, tag = 'input window, operand 4, single buffered']
    #allocation11 [shape = 'u8[16384]{0}', space=vmem, size = 0x4000, scoped, tag = 'input window, operand 5, single buffered']
    #allocation12 [shape = 's32[1]{0}', space=sflag, size = 0x4, scoped, tag = 'scoped memory for tpu_custom_call.1']
    #allocation13 [shape = 'u8[512]{0}', space=vmem, size = 0x400, scoped, tag = 'input window, operand 6, single buffered']
    #allocation14 [shape = 'u8[16384]{0}', space=vmem, size = 0x4000, scoped, tag = 'input window, operand 7, single buffered']
    #allocation15 [shape = 's32[1]{0}', space=sflag, size = 0x4, scoped, tag = 'scoped memory for tpu_custom_call.1']
    #allocation16 [shape = 'u8[512]{0}', space=vmem, size = 0x400, scoped, tag = 'input window, operand 8, single buffered']
    #allocation17 [shape = 'u8[512]{0}', space=vmem, size = 0x400, scoped, tag = 'input window, operand 10, single buffered']
    #allocation18 [shape = 's32[1]{0}', space=sflag, size = 0x4, scoped, tag = 'scoped memory for tpu_custom_call.1']
    #allocation19 [shape = 'u8[4096]{0}', space=vmem, size = 0x1000, scoped, tag = 'input window, operand 11, single buffered']
    #allocation20 [shape = 'u8[512]{0}', space=vmem, size = 0x400, scoped, tag = 'input window, operand 12, single buffered']
    #allocation21 [shape = 's32[1]{0}', space=sflag, size = 0x4, scoped, tag = 'scoped memory for tpu_custom_call.1']
    #allocation22 [shape = 'u8[16384]{0}', space=vmem, size = 0x4000, scoped, tag = 'input window, operand 13, single buffered']
    #allocation23 [shape = 'u8[512]{0}', space=vmem, size = 0x400, scoped, tag = 'input window, operand 14, single buffered']
    #allocation24 [shape = 's32[1]{0}', space=sflag, size = 0x4, scoped, tag = 'scoped memory for tpu_custom_call.1']
    #allocation25 [shape = 'u8[16384]{0}', space=vmem, size = 0x4000, scoped, tag = 'input window, operand 15, single buffered']
    #allocation26 [shape = 'u8[512]{0}', space=vmem, size = 0x400, scoped, tag = 'input window, operand 16, single buffered']
    #allocation27 [shape = 's32[1]{0}', space=sflag, size = 0x4, scoped, tag = 'scoped memory for tpu_custom_call.1']
    #allocation28 [shape = 'u8[16384]{0}', space=vmem, size = 0x4000, scoped, tag = 'input window, operand 19, single buffered']
    #allocation29 [shape = 'u8[32768]{0}', space=vmem, size = 0x8000, scoped, tag = 'output window, operand 0']
    %26 = vsyncpa [#allocation3], 0
    %s27 = scalar_lea.sflag [#allocation3], 1
    %28 = vsyncpa %s27, 0
    %29 = vsyncpa [#allocation6], 0
    %30 = vsyncpa [#allocation9], 0
    %31 = vsyncpa [#allocation12], 0
    %32 = vsyncpa [#allocation15], 0
    %33 = vsyncpa [#allocation18], 0
    %34 = vsyncpa [#allocation21], 0
    %35 = vsyncpa [#allocation24], 0
    %36 = vsyncpa [#allocation27], 0
    %37 = vsyncpa [#allocation4], 0
    %s38 = scalar_lea.sflag [#allocation4], 1
    %39 = vsyncpa %s38, 0
    loop: start=0, step=1, limit=4
    $region2: #{tpu_custom_call.1} parent=1 // loop_pre_header
      _
    $region3: #{tpu_custom_call.1} parent=1 // loop_header
      %s41 = sphi 0, %s45
      %p42 = scmp.ge.s32.totalorder %s41, 4
      %s51 = sphi 0, %s53
      %s54 = sphi 0, %s51
      %s55 = sphi 0, %s54
      %s71 = sphi 0, %s55
      %s75 = sphi 0, %s75
      %s77 = sphi 0, %s75
      %s78 = sphi 0, %s77
      %s92 = sphi 0, %s78
      %s96 = sphi 0, %s96
      %s98 = sphi 0, %s96
      %s99 = sphi 0, %s98
      %s113 = sphi 0, %s99
      %s117 = sphi 0, %s117
      %s119 = sphi 0, %s117
      %s120 = sphi 0, %s119
      %s134 = sphi 0, %s120
      %s138 = sphi 0, %s138
      %s140 = sphi 0, %s138
      %s141 = sphi 0, %s140
      %s155 = sphi 0, %s141
      %s159 = sphi 0, %s159
      %s161 = sphi 0, %s159
      %s162 = sphi 0, %s161
      %s176 = sphi 0, %s162
      %s180 = sphi 0, %s180
      %s182 = sphi 0, %s180
      %s183 = sphi 0, %s182
      %s197 = sphi 0, %s183
      %s201 = sphi 0, %s201
      %s203 = sphi 0, %s201
      %s204 = sphi 0, %s203
      %s218 = sphi 0, %s204
      %s222 = sphi 0, %s222
      %s224 = sphi 0, %s222
      %s225 = sphi 0, %s224
      %s239 = sphi 0, %s225
      %s243 = sphi 0, %s243
      %s245 = sphi 0, %s243
      %s246 = sphi 0, %s245
      %s260 = sphi 0, %s246
      %s264 = sphi 0, %s264
      %s266 = sphi 0, %s264
      %s267 = sphi 0, %s266
      %s281 = sphi 0, %s267
      %s285 = sphi 0, %s285
      %s287 = sphi 0, %s285
      %s288 = sphi 0, %s287
      %s302 = sphi 0, %s288
      %s306 = sphi 0, %s306
      %s308 = sphi 0, %s306
      %s309 = sphi 0, %s308
      %s323 = sphi 0, %s309
      %s327 = sphi 0, %s327
      %s329 = sphi 0, %s327
      %s330 = sphi 0, %s329
      %s344 = sphi 0, %s330
      %s348 = sphi 0, %s348
      %s350 = sphi 0, %s348
      %s351 = sphi 0, %s350
      %s365 = sphi 0, %s351
      %s369 = sphi 0, %s369
      %s371 = sphi 0, %s369
      %s372 = sphi 0, %s371
      %s386 = sphi 0, %s372
      %s390 = sphi 0, %s390
      %s392 = sphi 0, %s390
      %s393 = sphi 0, %s392
      %s407 = sphi 0, %s393
      %s411 = sphi 0, %s411
      %s413 = sphi 0, %s411
      %s414 = sphi 0, %s413
      %s428 = sphi 0, %s414
      %s432 = sphi 0, %s432
      %s434 = sphi 0, %s432
      %s435 = sphi 0, %s434
      %s449 = sphi 0, %s435
      %s453 = sphi 0, %s453
      %s455 = sphi 0, %s453
      %s456 = sphi 0, %s455
      %s470 = sphi 0, %s456
      %s474 = sphi 0, %s474
      %s476 = sphi 0, %s474
      %s477 = sphi 0, %s476
      %s491 = sphi 0, %s477
      %s497 = sphi 0, %s499
      %s500 = sphi 0, %s497
      %s501 = sphi 0, %s500
      %s517 = sphi 0, %s501
    $region4: #{tpu_custom_call.1} parent=1 // loop_header_branch
      %44 = sbr.rel (%p42) target = $region8
    $region5: #{tpu_custom_call.1} parent=1 // loop_body
      %s46 = ssub.s32 %s41, 1
      %s47 = ssub.s32 %s41, 2
      %s48 = sadd.s32 %s41, 1
      %s49 = ssub.s32 %s41, %s48
      %p50 = scmp.eq.s32.totalorder %s49, 0
      %s52 = sadd.s32 %s51, 1
      %s53 = scalar_select %p50, %s51, %s52
      %p56 = pneg %p50
      %p57 = scmp.eq.s32.totalorder %s41, 1
      %p58 = por %p56, %p57
      %p59 = scmp.ne.s32.totalorder %s51, %s54
      %p60 = scmp.eq.s32.totalorder %s41, 0
      %p61 = por %p59, %p60
      %p62 = scmp.ne.s32.totalorder %s51, %s54
      %p63 = scmp.eq.s32.totalorder %s46, 1
      %p64 = por %p62, %p63
      %p65 = scmp.ne.s32.totalorder %s54, %s55
      %p66 = scmp.eq.s32.totalorder %s46, 0
      %p67 = por %p65, %p66
      %p68 = scmp.ne.s32.totalorder %s54, %s55
      %p69 = scmp.eq.s32.totalorder %s47, 1
      %p70 = por %p68, %p69
      %p72 = scmp.ne.s32.totalorder %s55, %s71
      %p73 = scmp.eq.s32.totalorder %s47, 0
      %p74 = por %p72, %p73
      %s76 = sadd.s32 %s75, 1
      %p79 = scmp.eq.s32.totalorder %s41, 1
      %p80 = scmp.ne.s32.totalorder %s75, %s77
      %p81 = scmp.eq.s32.totalorder %s41, 0
      %p82 = por %p80, %p81
      %p83 = scmp.ne.s32.totalorder %s75, %s77
      %p84 = scmp.eq.s32.totalorder %s46, 1
      %p85 = por %p83, %p84
      %p86 = scmp.ne.s32.totalorder %s77, %s78
      %p87 = scmp.eq.s32.totalorder %s46, 0
      %p88 = por %p86, %p87
      %p89 = scmp.ne.s32.totalorder %s77, %s78
      %p90 = scmp.eq.s32.totalorder %s47, 1
      %p91 = por %p89, %p90
      %p93 = scmp.ne.s32.totalorder %s78, %s92
      %p94 = scmp.eq.s32.totalorder %s47, 0
      %p95 = por %p93, %p94
      %s97 = sadd.s32 %s96, 1
      %p100 = scmp.eq.s32.totalorder %s41, 1
      %p101 = scmp.ne.s32.totalorder %s96, %s98
      %p102 = scmp.eq.s32.totalorder %s41, 0
      %p103 = por %p101, %p102
      %p104 = scmp.ne.s32.totalorder %s96, %s98
      %p105 = scmp.eq.s32.totalorder %s46, 1
      %p106 = por %p104, %p105
      %p107 = scmp.ne.s32.totalorder %s98, %s99
      %p108 = scmp.eq.s32.totalorder %s46, 0
      %p109 = por %p107, %p108
      %p110 = scmp.ne.s32.totalorder %s98, %s99
      %p111 = scmp.eq.s32.totalorder %s47, 1
      %p112 = por %p110, %p111
      %p114 = scmp.ne.s32.totalorder %s99, %s113
      %p115 = scmp.eq.s32.totalorder %s47, 0
      %p116 = por %p114, %p115
      %s118 = sadd.s32 %s117, 1
      %p121 = scmp.eq.s32.totalorder %s41, 1
      %p122 = scmp.ne.s32.totalorder %s117, %s119
      %p123 = scmp.eq.s32.totalorder %s41, 0
      %p124 = por %p122, %p123
      %p125 = scmp.ne.s32.totalorder %s117, %s119
      %p126 = scmp.eq.s32.totalorder %s46, 1
      %p127 = por %p125, %p126
      %p128 = scmp.ne.s32.totalorder %s119, %s120
      %p129 = scmp.eq.s32.totalorder %s46, 0
      %p130 = por %p128, %p129
      %p131 = scmp.ne.s32.totalorder %s119, %s120
      %p132 = scmp.eq.s32.totalorder %s47, 1
      %p133 = por %p131, %p132
      %p135 = scmp.ne.s32.totalorder %s120, %s134
      %p136 = scmp.eq.s32.totalorder %s47, 0
      %p137 = por %p135, %p136
      %s139 = sadd.s32 %s138, 1
      %p142 = scmp.eq.s32.totalorder %s41, 1
      %p143 = scmp.ne.s32.totalorder %s138, %s140
      %p144 = scmp.eq.s32.totalorder %s41, 0
      %p145 = por %p143, %p144
      %p146 = scmp.ne.s32.totalorder %s138, %s140
      %p147 = scmp.eq.s32.totalorder %s46, 1
      %p148 = por %p146, %p147
      %p149 = scmp.ne.s32.totalorder %s140, %s141
      %p150 = scmp.eq.s32.totalorder %s46, 0
      %p151 = por %p149, %p150
      %p152 = scmp.ne.s32.totalorder %s140, %s141
      %p153 = scmp.eq.s32.totalorder %s47, 1
      %p154 = por %p152, %p153
      %p156 = scmp.ne.s32.totalorder %s141, %s155
      %p157 = scmp.eq.s32.totalorder %s47, 0
      %p158 = por %p156, %p157
      %s160 = sadd.s32 %s159, 1
      %p163 = scmp.eq.s32.totalorder %s41, 1
      %p164 = scmp.ne.s32.totalorder %s159, %s161
      %p165 = scmp.eq.s32.totalorder %s41, 0
      %p166 = por %p164, %p165
      %p167 = scmp.ne.s32.totalorder %s159, %s161
      %p168 = scmp.eq.s32.totalorder %s46, 1
      %p169 = por %p167, %p168
      %p170 = scmp.ne.s32.totalorder %s161, %s162
      %p171 = scmp.eq.s32.totalorder %s46, 0
      %p172 = por %p170, %p171
      %p173 = scmp.ne.s32.totalorder %s161, %s162
      %p174 = scmp.eq.s32.totalorder %s47, 1
      %p175 = por %p173, %p174
      %p177 = scmp.ne.s32.totalorder %s162, %s176
      %p178 = scmp.eq.s32.totalorder %s47, 0
      %p179 = por %p177, %p178
      %s181 = sadd.s32 %s180, 1
      %p184 = scmp.eq.s32.totalorder %s41, 1
      %p185 = scmp.ne.s32.totalorder %s180, %s182
      %p186 = scmp.eq.s32.totalorder %s41, 0
      %p187 = por %p185, %p186
      %p188 = scmp.ne.s32.totalorder %s180, %s182
      %p189 = scmp.eq.s32.totalorder %s46, 1
      %p190 = por %p188, %p189
      %p191 = scmp.ne.s32.totalorder %s182, %s183
      %p192 = scmp.eq.s32.totalorder %s46, 0
      %p193 = por %p191, %p192
      %p194 = scmp.ne.s32.totalorder %s182, %s183
      %p195 = scmp.eq.s32.totalorder %s47, 1
      %p196 = por %p194, %p195
      %p198 = scmp.ne.s32.totalorder %s183, %s197
      %p199 = scmp.eq.s32.totalorder %s47, 0
      %p200 = por %p198, %p199
      %s202 = sadd.s32 %s201, 1
      %p205 = scmp.eq.s32.totalorder %s41, 1
      %p206 = scmp.ne.s32.totalorder %s201, %s203
      %p207 = scmp.eq.s32.totalorder %s41, 0
      %p208 = por %p206, %p207
      %p209 = scmp.ne.s32.totalorder %s201, %s203
      %p210 = scmp.eq.s32.totalorder %s46, 1
      %p211 = por %p209, %p210
      %p212 = scmp.ne.s32.totalorder %s203, %s204
      %p213 = scmp.eq.s32.totalorder %s46, 0
      %p214 = por %p212, %p213
      %p215 = scmp.ne.s32.totalorder %s203, %s204
      %p216 = scmp.eq.s32.totalorder %s47, 1
      %p217 = por %p215, %p216
      %p219 = scmp.ne.s32.totalorder %s204, %s218
      %p220 = scmp.eq.s32.totalorder %s47, 0
      %p221 = por %p219, %p220
      %s223 = sadd.s32 %s222, 1
      %p226 = scmp.eq.s32.totalorder %s41, 1
      %p227 = scmp.ne.s32.totalorder %s222, %s224
      %p228 = scmp.eq.s32.totalorder %s41, 0
      %p229 = por %p227, %p228
      %p230 = scmp.ne.s32.totalorder %s222, %s224
      %p231 = scmp.eq.s32.totalorder %s46, 1
      %p232 = por %p230, %p231
      %p233 = scmp.ne.s32.totalorder %s224, %s225
      %p234 = scmp.eq.s32.totalorder %s46, 0
      %p235 = por %p233, %p234
      %p236 = scmp.ne.s32.totalorder %s224, %s225
      %p237 = scmp.eq.s32.totalorder %s47, 1
      %p238 = por %p236, %p237
      %p240 = scmp.ne.s32.totalorder %s225, %s239
      %p241 = scmp.eq.s32.totalorder %s47, 0
      %p242 = por %p240, %p241
      %s244 = sadd.s32 %s243, 1
      %p247 = scmp.eq.s32.totalorder %s41, 1
      %p248 = scmp.ne.s32.totalorder %s243, %s245
      %p249 = scmp.eq.s32.totalorder %s41, 0
      %p250 = por %p248, %p249
      %p251 = scmp.ne.s32.totalorder %s243, %s245
      %p252 = scmp.eq.s32.totalorder %s46, 1
      %p253 = por %p251, %p252
      %p254 = scmp.ne.s32.totalorder %s245, %s246
      %p255 = scmp.eq.s32.totalorder %s46, 0
      %p256 = por %p254, %p255
      %p257 = scmp.ne.s32.totalorder %s245, %s246
      %p258 = scmp.eq.s32.totalorder %s47, 1
      %p259 = por %p257, %p258
      %p261 = scmp.ne.s32.totalorder %s246, %s260
      %p262 = scmp.eq.s32.totalorder %s47, 0
      %p263 = por %p261, %p262
      %s265 = sadd.s32 %s264, 1
      %p268 = scmp.eq.s32.totalorder %s41, 1
      %p269 = scmp.ne.s32.totalorder %s264, %s266
      %p270 = scmp.eq.s32.totalorder %s41, 0
      %p271 = por %p269, %p270
      %p272 = scmp.ne.s32.totalorder %s264, %s266
      %p273 = scmp.eq.s32.totalorder %s46, 1
      %p274 = por %p272, %p273
      %p275 = scmp.ne.s32.totalorder %s266, %s267
      %p276 = scmp.eq.s32.totalorder %s46, 0
      %p277 = por %p275, %p276
      %p278 = scmp.ne.s32.totalorder %s266, %s267
      %p279 = scmp.eq.s32.totalorder %s47, 1
      %p280 = por %p278, %p279
      %p282 = scmp.ne.s32.totalorder %s267, %s281
      %p283 = scmp.eq.s32.totalorder %s47, 0
      %p284 = por %p282, %p283
      %s286 = sadd.s32 %s285, 1
      %p289 = scmp.eq.s32.totalorder %s41, 1
      %p290 = scmp.ne.s32.totalorder %s285, %s287
      %p291 = scmp.eq.s32.totalorder %s41, 0
      %p292 = por %p290, %p291
      %p293 = scmp.ne.s32.totalorder %s285, %s287
      %p294 = scmp.eq.s32.totalorder %s46, 1
      %p295 = por %p293, %p294
      %p296 = scmp.ne.s32.totalorder %s287, %s288
      %p297 = scmp.eq.s32.totalorder %s46, 0
      %p298 = por %p296, %p297
      %p299 = scmp.ne.s32.totalorder %s287, %s288
      %p300 = scmp.eq.s32.totalorder %s47, 1
      %p301 = por %p299, %p300
      %p303 = scmp.ne.s32.totalorder %s288, %s302
      %p304 = scmp.eq.s32.totalorder %s47, 0
      %p305 = por %p303, %p304
      %s307 = sadd.s32 %s306, 1
      %p310 = scmp.eq.s32.totalorder %s41, 1
      %p311 = scmp.ne.s32.totalorder %s306, %s308
      %p312 = scmp.eq.s32.totalorder %s41, 0
      %p313 = por %p311, %p312
      %p314 = scmp.ne.s32.totalorder %s306, %s308
      %p315 = scmp.eq.s32.totalorder %s46, 1
      %p316 = por %p314, %p315
      %p317 = scmp.ne.s32.totalorder %s308, %s309
      %p318 = scmp.eq.s32.totalorder %s46, 0
      %p319 = por %p317, %p318
      %p320 = scmp.ne.s32.totalorder %s308, %s309
      %p321 = scmp.eq.s32.totalorder %s47, 1
      %p322 = por %p320, %p321
      %p324 = scmp.ne.s32.totalorder %s309, %s323
      %p325 = scmp.eq.s32.totalorder %s47, 0
      %p326 = por %p324, %p325
      %s328 = sadd.s32 %s327, 1
      %p331 = scmp.eq.s32.totalorder %s41, 1
      %p332 = scmp.ne.s32.totalorder %s327, %s329
      %p333 = scmp.eq.s32.totalorder %s41, 0
      %p334 = por %p332, %p333
      %p335 = scmp.ne.s32.totalorder %s327, %s329
      %p336 = scmp.eq.s32.totalorder %s46, 1
      %p337 = por %p335, %p336
      %p338 = scmp.ne.s32.totalorder %s329, %s330
      %p339 = scmp.eq.s32.totalorder %s46, 0
      %p340 = por %p338, %p339
      %p341 = scmp.ne.s32.totalorder %s329, %s330
      %p342 = scmp.eq.s32.totalorder %s47, 1
      %p343 = por %p341, %p342
      %p345 = scmp.ne.s32.totalorder %s330, %s344
      %p346 = scmp.eq.s32.totalorder %s47, 0
      %p347 = por %p345, %p346
      %s349 = sadd.s32 %s348, 1
      %p352 = scmp.eq.s32.totalorder %s41, 1
      %p353 = scmp.ne.s32.totalorder %s348, %s350
      %p354 = scmp.eq.s32.totalorder %s41, 0
      %p355 = por %p353, %p354
      %p356 = scmp.ne.s32.totalorder %s348, %s350
      %p357 = scmp.eq.s32.totalorder %s46, 1
      %p358 = por %p356, %p357
      %p359 = scmp.ne.s32.totalorder %s350, %s351
      %p360 = scmp.eq.s32.totalorder %s46, 0
      %p361 = por %p359, %p360
      %p362 = scmp.ne.s32.totalorder %s350, %s351
      %p363 = scmp.eq.s32.totalorder %s47, 1
      %p364 = por %p362, %p363
      %p366 = scmp.ne.s32.totalorder %s351, %s365
      %p367 = scmp.eq.s32.totalorder %s47, 0
      %p368 = por %p366, %p367
      %s370 = sadd.s32 %s369, 1
      %p373 = scmp.eq.s32.totalorder %s41, 1
      %p374 = scmp.ne.s32.totalorder %s369, %s371
      %p375 = scmp.eq.s32.totalorder %s41, 0
      %p376 = por %p374, %p375
      %p377 = scmp.ne.s32.totalorder %s369, %s371
      %p378 = scmp.eq.s32.totalorder %s46, 1
      %p379 = por %p377, %p378
      %p380 = scmp.ne.s32.totalorder %s371, %s372
      %p381 = scmp.eq.s32.totalorder %s46, 0
      %p382 = por %p380, %p381
      %p383 = scmp.ne.s32.totalorder %s371, %s372
      %p384 = scmp.eq.s32.totalorder %s47, 1
      %p385 = por %p383, %p384
      %p387 = scmp.ne.s32.totalorder %s372, %s386
      %p388 = scmp.eq.s32.totalorder %s47, 0
      %p389 = por %p387, %p388
      %s391 = sadd.s32 %s390, 1
      %p394 = scmp.eq.s32.totalorder %s41, 1
      %p395 = scmp.ne.s32.totalorder %s390, %s392
      %p396 = scmp.eq.s32.totalorder %s41, 0
      %p397 = por %p395, %p396
      %p398 = scmp.ne.s32.totalorder %s390, %s392
      %p399 = scmp.eq.s32.totalorder %s46, 1
      %p400 = por %p398, %p399
      %p401 = scmp.ne.s32.totalorder %s392, %s393
      %p402 = scmp.eq.s32.totalorder %s46, 0
      %p403 = por %p401, %p402
      %p404 = scmp.ne.s32.totalorder %s392, %s393
      %p405 = scmp.eq.s32.totalorder %s47, 1
      %p406 = por %p404, %p405
      %p408 = scmp.ne.s32.totalorder %s393, %s407
      %p409 = scmp.eq.s32.totalorder %s47, 0
      %p410 = por %p408, %p409
      %s412 = sadd.s32 %s411, 1
      %p415 = scmp.eq.s32.totalorder %s41, 1
      %p416 = scmp.ne.s32.totalorder %s411, %s413
      %p417 = scmp.eq.s32.totalorder %s41, 0
      %p418 = por %p416, %p417
      %p419 = scmp.ne.s32.totalorder %s411, %s413
      %p420 = scmp.eq.s32.totalorder %s46, 1
      %p421 = por %p419, %p420
      %p422 = scmp.ne.s32.totalorder %s413, %s414
      %p423 = scmp.eq.s32.totalorder %s46, 0
      %p424 = por %p422, %p423
      %p425 = scmp.ne.s32.totalorder %s413, %s414
      %p426 = scmp.eq.s32.totalorder %s47, 1
      %p427 = por %p425, %p426
      %p429 = scmp.ne.s32.totalorder %s414, %s428
      %p430 = scmp.eq.s32.totalorder %s47, 0
      %p431 = por %p429, %p430
      %s433 = sadd.s32 %s432, 1
      %p436 = scmp.eq.s32.totalorder %s41, 1
      %p437 = scmp.ne.s32.totalorder %s432, %s434
      %p438 = scmp.eq.s32.totalorder %s41, 0
      %p439 = por %p437, %p438
      %p440 = scmp.ne.s32.totalorder %s432, %s434
      %p441 = scmp.eq.s32.totalorder %s46, 1
      %p442 = por %p440, %p441
      %p443 = scmp.ne.s32.totalorder %s434, %s435
      %p444 = scmp.eq.s32.totalorder %s46, 0
      %p445 = por %p443, %p444
      %p446 = scmp.ne.s32.totalorder %s434, %s435
      %p447 = scmp.eq.s32.totalorder %s47, 1
      %p448 = por %p446, %p447
      %p450 = scmp.ne.s32.totalorder %s435, %s449
      %p451 = scmp.eq.s32.totalorder %s47, 0
      %p452 = por %p450, %p451
      %s454 = sadd.s32 %s453, 1
      %p457 = scmp.eq.s32.totalorder %s41, 1
      %p458 = scmp.ne.s32.totalorder %s453, %s455
      %p459 = scmp.eq.s32.totalorder %s41, 0
      %p460 = por %p458, %p459
      %p461 = scmp.ne.s32.totalorder %s453, %s455
      %p462 = scmp.eq.s32.totalorder %s46, 1
      %p463 = por %p461, %p462
      %p464 = scmp.ne.s32.totalorder %s455, %s456
      %p465 = scmp.eq.s32.totalorder %s46, 0
      %p466 = por %p464, %p465
      %p467 = scmp.ne.s32.totalorder %s455, %s456
      %p468 = scmp.eq.s32.totalorder %s47, 1
      %p469 = por %p467, %p468
      %p471 = scmp.ne.s32.totalorder %s456, %s470
      %p472 = scmp.eq.s32.totalorder %s47, 0
      %p473 = por %p471, %p472
      %s475 = sadd.s32 %s474, 1
      %p478 = scmp.eq.s32.totalorder %s41, 1
      %p479 = scmp.ne.s32.totalorder %s474, %s476
      %p480 = scmp.eq.s32.totalorder %s41, 0
      %p481 = por %p479, %p480
      %p482 = scmp.ne.s32.totalorder %s474, %s476
      %p483 = scmp.eq.s32.totalorder %s46, 1
      %p484 = por %p482, %p483
      %p485 = scmp.ne.s32.totalorder %s476, %s477
      %p486 = scmp.eq.s32.totalorder %s46, 0
      %p487 = por %p485, %p486
      %p488 = scmp.ne.s32.totalorder %s476, %s477
      %p489 = scmp.eq.s32.totalorder %s47, 1
      %p490 = por %p488, %p489
      %p492 = scmp.ne.s32.totalorder %s477, %s491
      %p493 = scmp.eq.s32.totalorder %s47, 0
      %p494 = por %p492, %p493
      %s495 = ssub.s32 %s41, %s48
      %p496 = scmp.eq.s32.totalorder %s495, 0
      %s498 = sadd.s32 %s497, 1
      %s499 = scalar_select %p496, %s497, %s498
      %p502 = pneg %p496
      %p503 = scmp.eq.s32.totalorder %s41, 1
      %p504 = por %p502, %p503
      %p505 = scmp.ne.s32.totalorder %s497, %s500
      %p506 = scmp.eq.s32.totalorder %s41, 0
      %p507 = por %p505, %p506
      %p508 = scmp.ne.s32.totalorder %s497, %s500
      %p509 = scmp.eq.s32.totalorder %s46, 1
      %p510 = por %p508, %p509
      %p511 = scmp.ne.s32.totalorder %s500, %s501
      %p512 = scmp.eq.s32.totalorder %s46, 0
      %p513 = por %p511, %p512
      %p514 = scmp.ne.s32.totalorder %s500, %s501
      %p515 = scmp.eq.s32.totalorder %s47, 1
      %p516 = por %p514, %p515
      %p518 = scmp.ne.s32.totalorder %s501, %s517
      %p519 = scmp.eq.s32.totalorder %s47, 0
      %p520 = por %p518, %p519
      %p521 = scmp.le.s32.totalorder 1, %s41
      %p522 = scmp.lt.s32.totalorder %s41, 3
      %p523 = pnand %p521, %p522
      %p524 = pneg %p523
      // Predicated region
      $region9: #{tpu_custom_call.1} parent=5 // pred_check
        _
      $region10: #{tpu_custom_call.1} parent=5 // pred_check_branch
        %526 = sbr.rel (%p523) target = $region12
      $region11: #{tpu_custom_call.1} parent=5 // pred_region
        %s527 = ssub.s32 %s41, 1
        // Predicated region
        $region13: #{tpu_custom_call.1} parent=11 // pred_check
          %p528 = pneg %p88
        $region14: #{tpu_custom_call.1} parent=11 // pred_check_branch
          %530 = sbr.rel (%p528) target = $region16
        $region15: #{tpu_custom_call.1} parent=11 // pred_region
          %s532 = ssub.s32 256, 256
          %533 = vsyncadd [#allocation6], %s532
          %s534 = sshll.u32 [#allocation5], 4
          %s535 = int_to_ptr.vmem [resolvable:$true] %s534
          %540 = dma.hbm_to_vmem [thread:$0]  %s1, 256, %s535, [#allocation6], 128, 128, 8
        $region16: #{tpu_custom_call.1} parent=11 // pred_fallthru
          _
        // Predicated region
        $region17: #{tpu_custom_call.1} parent=11 // pred_check
          %p541 = pneg %p109
        $region18: #{tpu_custom_call.1} parent=11 // pred_check_branch
          %543 = sbr.rel (%p541) target = $region20
        $region19: #{tpu_custom_call.1} parent=11 // pred_region
          %s545 = ssub.s32 16, 16
          %546 = vsyncadd [#allocation6], %s545
          %s548 = sshll.u32 [#allocation7], 4
          %s549 = int_to_ptr.vmem [resolvable:$true] %s548
          %551 = dma.hbm_to_vmem [thread:$0]  %s2, 16, %s549, [#allocation6]
        $region20: #{tpu_custom_call.1} parent=11 // pred_fallthru
          _
        // Predicated region
        $region21: #{tpu_custom_call.1} parent=11 // pred_check
          %p552 = pneg %p130
        $region22: #{tpu_custom_call.1} parent=11 // pred_check_branch
          %554 = sbr.rel (%p552) target = $region24
        $region23: #{tpu_custom_call.1} parent=11 // pred_region
          %s556 = ssub.s32 512, 512
          %557 = vsyncadd [#allocation9], %s556
          %s558 = sshll.u32 [#allocation8], 4
          %s559 = int_to_ptr.vmem [resolvable:$true] %s558
          %564 = dma.hbm_to_vmem [thread:$0]  %s3, 512, %s559, [#allocation9], 128, 128, 8
        $region24: #{tpu_custom_call.1} parent=11 // pred_fallthru
          _
        // Predicated region
        $region25: #{tpu_custom_call.1} parent=11 // pred_check
          %p565 = pneg %p151
        $region26: #{tpu_custom_call.1} parent=11 // pred_check_branch
          %567 = sbr.rel (%p565) target = $region28
        $region27: #{tpu_custom_call.1} parent=11 // pred_region
          %s569 = ssub.s32 16, 16
          %570 = vsyncadd [#allocation9], %s569
          %s572 = sshll.u32 [#allocation10], 4
          %s573 = int_to_ptr.vmem [resolvable:$true] %s572
          %575 = dma.hbm_to_vmem [thread:$0]  %s4, 16, %s573, [#allocation9]
        $region28: #{tpu_custom_call.1} parent=11 // pred_fallthru
          _
        // Predicated region
        $region29: #{tpu_custom_call.1} parent=11 // pred_check
          %p576 = pneg %p172
        $region30: #{tpu_custom_call.1} parent=11 // pred_check_branch
          %578 = sbr.rel (%p576) target = $region32
        $region31: #{tpu_custom_call.1} parent=11 // pred_region
          %s580 = ssub.s32 512, 512
          %581 = vsyncadd [#allocation12], %s580
          %s582 = sshll.u32 [#allocation11], 4
          %s583 = int_to_ptr.vmem [resolvable:$true] %s582
          %588 = dma.hbm_to_vmem [thread:$0]  %s5, 512, %s583, [#allocation12], 128, 128, 8
        $region32: #{tpu_custom_call.1} parent=11 // pred_fallthru
          _
        // Predicated region
        $region33: #{tpu_custom_call.1} parent=11 // pred_check
          %p589 = pneg %p193
        $region34: #{tpu_custom_call.1} parent=11 // pred_check_branch
          %591 = sbr.rel (%p589) target = $region36
        $region35: #{tpu_custom_call.1} parent=11 // pred_region
          %s593 = ssub.s32 16, 16
          %594 = vsyncadd [#allocation12], %s593
          %s596 = sshll.u32 [#allocation13], 4
          %s597 = int_to_ptr.vmem [resolvable:$true] %s596
          %599 = dma.hbm_to_vmem [thread:$0]  %s6, 16, %s597, [#allocation12]
        $region36: #{tpu_custom_call.1} parent=11 // pred_fallthru
          _
        // Predicated region
        $region37: #{tpu_custom_call.1} parent=11 // pred_check
          %p600 = pneg %p214
        $region38: #{tpu_custom_call.1} parent=11 // pred_check_branch
          %602 = sbr.rel (%p600) target = $region40
        $region39: #{tpu_custom_call.1} parent=11 // pred_region
          %s604 = ssub.s32 512, 512
          %605 = vsyncadd [#allocation15], %s604
          %s606 = sshll.u32 [#allocation14], 4
          %s607 = int_to_ptr.vmem [resolvable:$true] %s606
          %612 = dma.hbm_to_vmem [thread:$0]  %s7, 512, %s607, [#allocation15], 128, 128, 8
        $region40: #{tpu_custom_call.1} parent=11 // pred_fallthru
          _
        // Predicated region
        $region41: #{tpu_custom_call.1} parent=11 // pred_check
          %p613 = pneg %p235
        $region42: #{tpu_custom_call.1} parent=11 // pred_check_branch
          %615 = sbr.rel (%p613) target = $region44
        $region43: #{tpu_custom_call.1} parent=11 // pred_region
          %s617 = ssub.s32 16, 16
          %618 = vsyncadd [#allocation15], %s617
          %s620 = sshll.u32 [#allocation16], 4
          %s621 = int_to_ptr.vmem [resolvable:$true] %s620
          %623 = dma.hbm_to_vmem [thread:$0]  %s8, 16, %s621, [#allocation15]
        $region44: #{tpu_custom_call.1} parent=11 // pred_fallthru
          _
        // Predicated region
        $region45: #{tpu_custom_call.1} parent=11 // pred_check
          %p624 = pneg %p256
        $region46: #{tpu_custom_call.1} parent=11 // pred_check_branch
          %626 = sbr.rel (%p624) target = $region48
        $region47: #{tpu_custom_call.1} parent=11 // pred_region
          _
        $region48: #{tpu_custom_call.1} parent=11 // pred_fallthru
          _
        // Predicated region
        $region49: #{tpu_custom_call.1} parent=11 // pred_check
          %p627 = pneg %p277
        $region50: #{tpu_custom_call.1} parent=11 // pred_check_branch
          %629 = sbr.rel (%p627) target = $region52
        $region51: #{tpu_custom_call.1} parent=11 // pred_region
          %s631 = ssub.s32 16, 16
          %632 = vsyncadd [#allocation18], %s631
          %s634 = sshll.u32 [#allocation17], 4
          %s635 = int_to_ptr.vmem [resolvable:$true] %s634
          %637 = dma.hbm_to_vmem [thread:$0]  %s10, 16, %s635, [#allocation18]
        $region52: #{tpu_custom_call.1} parent=11 // pred_fallthru
          _
        // Predicated region
        $region53: #{tpu_custom_call.1} parent=11 // pred_check
          %p638 = pneg %p298
        $region54: #{tpu_custom_call.1} parent=11 // pred_check_branch
          %640 = sbr.rel (%p638) target = $region56
        $region55: #{tpu_custom_call.1} parent=11 // pred_region
          %s642 = ssub.s32 128, 128
          %643 = vsyncadd [#allocation18], %s642
          %s645 = sshll.u32 [#allocation19], 4
          %s646 = int_to_ptr.vmem [resolvable:$true] %s645
          %648 = dma.hbm_to_vmem [thread:$0]  %s11, 128, %s646, [#allocation18]
        $region56: #{tpu_custom_call.1} parent=11 // pred_fallthru
          _
        // Predicated region
        $region57: #{tpu_custom_call.1} parent=11 // pred_check
          %p649 = pneg %p319
        $region58: #{tpu_custom_call.1} parent=11 // pred_check_branch
          %651 = sbr.rel (%p649) target = $region60
        $region59: #{tpu_custom_call.1} parent=11 // pred_region
          %s653 = ssub.s32 16, 16
          %654 = vsyncadd [#allocation21], %s653
          %s656 = sshll.u32 [#allocation20], 4
          %s657 = int_to_ptr.vmem [resolvable:$true] %s656
          %659 = dma.hbm_to_vmem [thread:$0]  %s12, 16, %s657, [#allocation21]
        $region60: #{tpu_custom_call.1} parent=11 // pred_fallthru
          _
        // Predicated region
        $region61: #{tpu_custom_call.1} parent=11 // pred_check
          %p660 = pneg %p340
        $region62: #{tpu_custom_call.1} parent=11 // pred_check_branch
          %662 = sbr.rel (%p660) target = $region64
        $region63: #{tpu_custom_call.1} parent=11 // pred_region
          %s664 = ssub.s32 512, 512
          %665 = vsyncadd [#allocation21], %s664
          %s666 = sshll.u32 [#allocation22], 4
          %s667 = int_to_ptr.vmem [resolvable:$true] %s666
          %672 = dma.hbm_to_vmem [thread:$0]  %s13, 512, %s667, [#allocation21], 128, 128, 8
        $region64: #{tpu_custom_call.1} parent=11 // pred_fallthru
          _
        // Predicated region
        $region65: #{tpu_custom_call.1} parent=11 // pred_check
          %p673 = pneg %p361
        $region66: #{tpu_custom_call.1} parent=11 // pred_check_branch
          %675 = sbr.rel (%p673) target = $region68
        $region67: #{tpu_custom_call.1} parent=11 // pred_region
          %s677 = ssub.s32 16, 16
          %678 = vsyncadd [#allocation24], %s677
          %s680 = sshll.u32 [#allocation23], 4
          %s681 = int_to_ptr.vmem [resolvable:$true] %s680
          %683 = dma.hbm_to_vmem [thread:$0]  %s14, 16, %s681, [#allocation24]
        $region68: #{tpu_custom_call.1} parent=11 // pred_fallthru
          _
        // Predicated region
        $region69: #{tpu_custom_call.1} parent=11 // pred_check
          %p684 = pneg %p382
        $region70: #{tpu_custom_call.1} parent=11 // pred_check_branch
          %686 = sbr.rel (%p684) target = $region72
        $region71: #{tpu_custom_call.1} parent=11 // pred_region
          %s688 = ssub.s32 512, 512
          %689 = vsyncadd [#allocation24], %s688
          %s690 = sshll.u32 [#allocation25], 4
          %s691 = int_to_ptr.vmem [resolvable:$true] %s690
          %696 = dma.hbm_to_vmem [thread:$0]  %s15, 512, %s691, [#allocation24], 128, 128, 8
        $region72: #{tpu_custom_call.1} parent=11 // pred_fallthru
          _
        // Predicated region
        $region73: #{tpu_custom_call.1} parent=11 // pred_check
          %p697 = pneg %p403
        $region74: #{tpu_custom_call.1} parent=11 // pred_check_branch
          %699 = sbr.rel (%p697) target = $region76
        $region75: #{tpu_custom_call.1} parent=11 // pred_region
          %s701 = ssub.s32 16, 16
          %702 = vsyncadd [#allocation27], %s701
          %s704 = sshll.u32 [#allocation26], 4
          %s705 = int_to_ptr.vmem [resolvable:$true] %s704
          %707 = dma.hbm_to_vmem [thread:$0]  %s16, 16, %s705, [#allocation27]
        $region76: #{tpu_custom_call.1} parent=11 // pred_fallthru
          _
        // Predicated region
        $region77: #{tpu_custom_call.1} parent=11 // pred_check
          %p708 = pneg %p424
        $region78: #{tpu_custom_call.1} parent=11 // pred_check_branch
          %710 = sbr.rel (%p708) target = $region80
        $region79: #{tpu_custom_call.1} parent=11 // pred_region
          _
        $region80: #{tpu_custom_call.1} parent=11 // pred_fallthru
          _
        // Predicated region
        $region81: #{tpu_custom_call.1} parent=11 // pred_check
          %p711 = pneg %p445
        $region82: #{tpu_custom_call.1} parent=11 // pred_check_branch
          %713 = sbr.rel (%p711) target = $region84
        $region83: #{tpu_custom_call.1} parent=11 // pred_region
          _
        $region84: #{tpu_custom_call.1} parent=11 // pred_fallthru
          _
        // Predicated region
        $region85: #{tpu_custom_call.1} parent=11 // pred_check
          %p714 = pneg %p466
        $region86: #{tpu_custom_call.1} parent=11 // pred_check_branch
          %716 = sbr.rel (%p714) target = $region88
        $region87: #{tpu_custom_call.1} parent=11 // pred_region
          %s718 = ssub.s32 512, 512
          %719 = vsyncadd [#allocation27], %s718
          %s720 = sshll.u32 [#allocation28], 4
          %s721 = int_to_ptr.vmem [resolvable:$true] %s720
          %726 = dma.hbm_to_vmem [thread:$0]  %s19, 512, %s721, [#allocation27], 128, 128, 8
        $region88: #{tpu_custom_call.1} parent=11 // pred_fallthru
          _
        // Predicated region
        $region89: #{tpu_custom_call.1} parent=11 // pred_check
          %p727 = pneg %p487
        $region90: #{tpu_custom_call.1} parent=11 // pred_check_branch
          %729 = sbr.rel (%p727) target = $region92
        $region91: #{tpu_custom_call.1} parent=11 // pred_region
          _
        $region92: #{tpu_custom_call.1} parent=11 // pred_fallthru
          _
      $region12: #{tpu_custom_call.1} parent=5 // pred_fallthru
        _
      %p730 = scmp.lt.s32.totalorder %s41, 2
      // Predicated region
      $region93: #{tpu_custom_call.1} parent=5 // pred_check
        %p731 = pneg %p730
      $region94: #{tpu_custom_call.1} parent=5 // pred_check_branch
        %733 = sbr.rel (%p731) target = $region96
      $region95: #{tpu_custom_call.1} parent=5 // pred_region
        // Predicated region
        $region97: #{tpu_custom_call.1} parent=95 // pred_check
          %p734 = pneg %p61
        $region98: #{tpu_custom_call.1} parent=95 // pred_check_branch
          %736 = sbr.rel (%p734) target = $region100
        $region99: #{tpu_custom_call.1} parent=95 // pred_region
          %s737 = sand.u32 %s51, 1
          %s738 = scalar_lea.sflag [#allocation3], %s737
          %s739 = sand.u32 %s51, 1
          %s740 = smul.addr %s739, 8
          %s741 = scalar_lea.vmem [#allocation2], %s740
          %s743 = ssub.s32 128, 128
          %744 = vsyncadd %s738, %s743
          %s745 = smul.addr %s41, 128
          %s746 = scalar_lea.hbm %s0, %s745
          %s748 = sshll.u32 %s741, 4
          %s749 = int_to_ptr.vmem [resolvable:$true] %s748
          %751 = dma.hbm_to_vmem [thread:$0]  %s746, 128, %s749, %s738
        $region100: #{tpu_custom_call.1} parent=95 // pred_fallthru
          _
      $region96: #{tpu_custom_call.1} parent=5 // pred_fallthru
        _
      %p752 = scmp.le.s32.totalorder 1, %s41
      %p753 = scmp.lt.s32.totalorder %s41, 3
      %p754 = pnand %p752, %p753
      %p755 = pneg %p754
      // Predicated region
      $region101: #{tpu_custom_call.1} parent=5 // pred_check
        _
      $region102: #{tpu_custom_call.1} parent=5 // pred_check_branch
        %757 = sbr.rel (%p754) target = $region104
      $region103: #{tpu_custom_call.1} parent=5 // pred_region
        %s758 = ssub.s32 %s41, 1
        %s759 = sand.u32 %s54, 1
        %s760 = scalar_lea.sflag [#allocation3], %s759
        %s761 = sand.u32 %s54, 1
        %s762 = smul.addr %s761, 8
        %s763 = scalar_lea.vmem [#allocation2], %s762
        // Predicated region
        $region105: #{tpu_custom_call.1} parent=103 // pred_check
          %p764 = pneg %p67
        $region106: #{tpu_custom_call.1} parent=103 // pred_check_branch
          %766 = sbr.rel (%p764) target = $region108
        $region107: #{tpu_custom_call.1} parent=103 // pred_region
          %767 = dma.done %s760, 128
        $region108: #{tpu_custom_call.1} parent=103 // pred_fallthru
          _
        // Predicated region
        $region109: #{tpu_custom_call.1} parent=103 // pred_check
          %p768 = pneg %p88
        $region110: #{tpu_custom_call.1} parent=103 // pred_check_branch
          %770 = sbr.rel (%p768) target = $region112
        $region111: #{tpu_custom_call.1} parent=103 // pred_region
          %771 = dma.done [#allocation6], 256
        $region112: #{tpu_custom_call.1} parent=103 // pred_fallthru
          _
        // Predicated region
        $region113: #{tpu_custom_call.1} parent=103 // pred_check
          %p772 = pneg %p109
        $region114: #{tpu_custom_call.1} parent=103 // pred_check_branch
          %774 = sbr.rel (%p772) target = $region116
        $region115: #{tpu_custom_call.1} parent=103 // pred_region
          %775 = dma.done [#allocation6], 16
        $region116: #{tpu_custom_call.1} parent=103 // pred_fallthru
          _
        // Predicated region
        $region117: #{tpu_custom_call.1} parent=103 // pred_check
          %p776 = pneg %p130
        $region118: #{tpu_custom_call.1} parent=103 // pred_check_branch
          %778 = sbr.rel (%p776) target = $region120
        $region119: #{tpu_custom_call.1} parent=103 // pred_region
          %779 = dma.done [#allocation9], 512
        $region120: #{tpu_custom_call.1} parent=103 // pred_fallthru
          _
        // Predicated region
        $region121: #{tpu_custom_call.1} parent=103 // pred_check
          %p780 = pneg %p151
        $region122: #{tpu_custom_call.1} parent=103 // pred_check_branch
          %782 = sbr.rel (%p780) target = $region124
        $region123: #{tpu_custom_call.1} parent=103 // pred_region
          %783 = dma.done [#allocation9], 16
        $region124: #{tpu_custom_call.1} parent=103 // pred_fallthru
          _
        // Predicated region
        $region125: #{tpu_custom_call.1} parent=103 // pred_check
          %p784 = pneg %p172
        $region126: #{tpu_custom_call.1} parent=103 // pred_check_branch
          %786 = sbr.rel (%p784) target = $region128
        $region127: #{tpu_custom_call.1} parent=103 // pred_region
          %787 = dma.done [#allocation12], 512
        $region128: #{tpu_custom_call.1} parent=103 // pred_fallthru
          _
        // Predicated region
        $region129: #{tpu_custom_call.1} parent=103 // pred_check
          %p788 = pneg %p193
        $region130: #{tpu_custom_call.1} parent=103 // pred_check_branch
          %790 = sbr.rel (%p788) target = $region132
        $region131: #{tpu_custom_call.1} parent=103 // pred_region
          %791 = dma.done [#allocation12], 16
        $region132: #{tpu_custom_call.1} parent=103 // pred_fallthru
          _
        // Predicated region
        $region133: #{tpu_custom_call.1} parent=103 // pred_check
          %p792 = pneg %p214
        $region134: #{tpu_custom_call.1} parent=103 // pred_check_branch
          %794 = sbr.rel (%p792) target = $region136
        $region135: #{tpu_custom_call.1} parent=103 // pred_region
          %795 = dma.done [#allocation15], 512
        $region136: #{tpu_custom_call.1} parent=103 // pred_fallthru
          _
        // Predicated region
        $region137: #{tpu_custom_call.1} parent=103 // pred_check
          %p796 = pneg %p235
        $region138: #{tpu_custom_call.1} parent=103 // pred_check_branch
          %798 = sbr.rel (%p796) target = $region140
        $region139: #{tpu_custom_call.1} parent=103 // pred_region
          %799 = dma.done [#allocation15], 16
        $region140: #{tpu_custom_call.1} parent=103 // pred_fallthru
          _
        // Predicated region
        $region141: #{tpu_custom_call.1} parent=103 // pred_check
          %p800 = pneg %p277
        $region142: #{tpu_custom_call.1} parent=103 // pred_check_branch
          %802 = sbr.rel (%p800) target = $region144
        $region143: #{tpu_custom_call.1} parent=103 // pred_region
          %803 = dma.done [#allocation18], 16
        $region144: #{tpu_custom_call.1} parent=103 // pred_fallthru
          _
        // Predicated region
        $region145: #{tpu_custom_call.1} parent=103 // pred_check
          %p804 = pneg %p298
        $region146: #{tpu_custom_call.1} parent=103 // pred_check_branch
          %806 = sbr.rel (%p804) target = $region148
        $region147: #{tpu_custom_call.1} parent=103 // pred_region
          %807 = dma.done [#allocation18], 128
        $region148: #{tpu_custom_call.1} parent=103 // pred_fallthru
          _
        // Predicated region
        $region149: #{tpu_custom_call.1} parent=103 // pred_check
          %p808 = pneg %p319
        $region150: #{tpu_custom_call.1} parent=103 // pred_check_branch
          %810 = sbr.rel (%p808) target = $region152
        $region151: #{tpu_custom_call.1} parent=103 // pred_region
          %811 = dma.done [#allocation21], 16
        $region152: #{tpu_custom_call.1} parent=103 // pred_fallthru
          _
        // Predicated region
        $region153: #{tpu_custom_call.1} parent=103 // pred_check
          %p812 = pneg %p340
        $region154: #{tpu_custom_call.1} parent=103 // pred_check_branch
          %814 = sbr.rel (%p812) target = $region156
        $region155: #{tpu_custom_call.1} parent=103 // pred_region
          %815 = dma.done [#allocation21], 512
        $region156: #{tpu_custom_call.1} parent=103 // pred_fallthru
          _
        // Predicated region
        $region157: #{tpu_custom_call.1} parent=103 // pred_check
          %p816 = pneg %p361
        $region158: #{tpu_custom_call.1} parent=103 // pred_check_branch
          %818 = sbr.rel (%p816) target = $region160
        $region159: #{tpu_custom_call.1} parent=103 // pred_region
          %819 = dma.done [#allocation24], 16
        $region160: #{tpu_custom_call.1} parent=103 // pred_fallthru
          _
        // Predicated region
        $region161: #{tpu_custom_call.1} parent=103 // pred_check
          %p820 = pneg %p382
        $region162: #{tpu_custom_call.1} parent=103 // pred_check_branch
          %822 = sbr.rel (%p820) target = $region164
        $region163: #{tpu_custom_call.1} parent=103 // pred_region
          %823 = dma.done [#allocation24], 512
        $region164: #{tpu_custom_call.1} parent=103 // pred_fallthru
          _
        // Predicated region
        $region165: #{tpu_custom_call.1} parent=103 // pred_check
          %p824 = pneg %p403
        $region166: #{tpu_custom_call.1} parent=103 // pred_check_branch
          %826 = sbr.rel (%p824) target = $region168
        $region167: #{tpu_custom_call.1} parent=103 // pred_region
          %827 = dma.done [#allocation27], 16
        $region168: #{tpu_custom_call.1} parent=103 // pred_fallthru
          _
        // Predicated region
        $region169: #{tpu_custom_call.1} parent=103 // pred_check
          %p828 = pneg %p466
        $region170: #{tpu_custom_call.1} parent=103 // pred_check_branch
          %830 = sbr.rel (%p828) target = $region172
        $region171: #{tpu_custom_call.1} parent=103 // pred_region
          %831 = dma.done [#allocation27], 512
        $region172: #{tpu_custom_call.1} parent=103 // pred_fallthru
          _
        %s832 = sand.u32 %s54, 1
        %s833 = scalar_lea.sflag [#allocation3], %s832
        %s834 = sand.u32 %s54, 1
        %s835 = smul.addr %s834, 8
        %s836 = scalar_lea.vmem [#allocation2], %s835
        %p837 = pneg %p67
        %p838 = pneg %p64
        %p839 = pneg %p88
        %p840 = pneg %p85
        %p841 = pneg %p109
        %p842 = pneg %p106
        %p843 = pneg %p130
        %p844 = pneg %p127
        %p845 = pneg %p151
        %p846 = pneg %p148
        %p847 = pneg %p172
        %p848 = pneg %p169
        %p849 = pneg %p193
        %p850 = pneg %p190
        %p851 = pneg %p214
        %p852 = pneg %p211
        %p853 = pneg %p235
        %p854 = pneg %p232
        %p855 = pneg %p256
        %p856 = pneg %p253
        %p857 = pneg %p277
        %p858 = pneg %p274
        %p859 = pneg %p298
        %p860 = pneg %p295
        %p861 = pneg %p319
        %p862 = pneg %p316
        %p863 = pneg %p340
        %p864 = pneg %p337
        %p865 = pneg %p361
        %p866 = pneg %p358
        %p867 = pneg %p382
        %p868 = pneg %p379
        %p869 = pneg %p403
        %p870 = pneg %p400
        %p871 = pneg %p424
        %p872 = pneg %p421
        %p873 = pneg %p445
        %p874 = pneg %p442
        %p875 = pneg %p466
        %p876 = pneg %p463
        %p877 = pneg %p487
        %p878 = pneg %p484
        %p879 = pneg %p513
        %p880 = pneg %p510
        %s881 = sand.u32 %s500, 1
        %s882 = scalar_lea.sflag [#allocation4], %s881
        %s883 = sand.u32 %s500, 1
        %s884 = smul.addr %s883, 32
        %s885 = scalar_lea.vmem [#allocation29], %s884
        %v886 = vld [vmem:[%s763] sm:$0xff]
        %v887 = vld [vmem:[#allocation5] sm:$0xff]
        %v888 = vld [vmem:[#allocation5 + $0x8] sm:$0xff]
        %v889 = vld [vmem:[#allocation7] sm:$0x1]
        %v891 = vlaneseq
        %v892 = vshrl.u32 %v891, 7
        %v893 = vsub.s32 0, %v892
        %v894 = vrot.slane %v889, %v893
        %vm896 = vcmask 130048
        %v898 = vsel %vm896, %v886, 0
        %900 = vmatprep.subr.mxu0 0.0
        %901 = vmatpush1.msra.mxu0 %v887
        %902 = vmatprep.subr.mxu0 0.0
        %903 = vmatpush1.msra.mxu0 %v888
        %904 = vmatprep.subr.mxu0 0.0
        %905 = vmatpush1.msra.mxu0 0.0
        %906 = vmatprep.subr.mxu0 0.0
        %907 = vmatpush1.msra.mxu0 0.0
        %908 = vmatprep.subr.mxu0 0.0
        %909 = vmatpush1.msra.mxu0 0.0
        %910 = vmatprep.subr.mxu0 0.0
        %911 = vmatpush1.msra.mxu0 0.0
        %912 = vmatprep.subr.mxu0 0.0
        %913 = vmatpush1.msra.mxu0 0.0
        %914 = vmatprep.subr.mxu0 0.0
        %915 = vmatpush1.msra.mxu0 0.0
        %916 = vmatprep.subr.mxu0 0.0
        %917 = vmatpush1.msra.mxu0 0.0
        %918 = vmatprep.subr.mxu0 0.0
        %919 = vmatpush1.msra.mxu0 0.0
        %920 = vmatprep.subr.mxu0 0.0
        %921 = vmatpush1.msra.mxu0 0.0
        %922 = vmatprep.subr.mxu0 0.0
        %923 = vmatpush1.msra.mxu0 0.0
        %924 = vmatprep.subr.mxu0 0.0
        %925 = vmatpush1.msra.mxu0 0.0
        %926 = vmatprep.subr.mxu0 0.0
        %927 = vmatpush1.msra.mxu0 0.0
        %928 = vmatprep.subr.mxu0 0.0
        %929 = vmatpush1.msra.mxu0 0.0
        %930 = vmatprep.subr.mxu0 0.0
        %931 = vmatpush1.msra.mxu0 0.0
        %932 = vmatprep.subr.mxu0 0.0
        %933 = vmatpush1.msra.mxu0 0.0
        %934 = vmatprep.subr.mxu0 0.0
        %935 = vmatpush1.msra.mxu0 0.0
        %936 = vmatprep.subr.mxu0 0.0
        %937 = vmatpush1.msra.mxu0 0.0
        %938 = vmatprep.subr.mxu0 0.0
        %939 = vmatpush1.msra.mxu0 0.0
        %940 = vmatprep.subr.mxu0 0.0
        %941 = vmatpush1.msra.mxu0 0.0
        %942 = vmatprep.subr.mxu0 0.0
        %943 = vmatpush1.msra.mxu0 0.0
        %944 = vmatprep.subr.mxu0 0.0
        %945 = vmatpush1.msra.mxu0 0.0
        %946 = vmatprep.subr.mxu0 0.0
        %947 = vmatpush1.msra.mxu0 0.0
        %948 = vmatprep.subr.mxu0 0.0
        %949 = vmatpush1.msra.mxu0 0.0
        %950 = vmatprep.subr.mxu0 0.0
        %951 = vmatpush1.msra.mxu0 0.0
        %952 = vmatprep.subr.mxu0 0.0
        %953 = vmatpush1.msra.mxu0 0.0
        %954 = vmatprep.subr.mxu0 0.0
        %955 = vmatpush1.msra.mxu0 0.0
        %956 = vmatprep.subr.mxu0 0.0
        %957 = vmatpush1.msra.mxu0 0.0
        %958 = vmatprep.subr.mxu0 0.0
        %959 = vmatpush1.msra.mxu0 0.0
        %960 = vmatprep.subr.mxu0 0.0
        %961 = vmatpush1.msra.mxu0 0.0
        %962 = vmatprep.subr.mxu0 0.0
        %963 = vmatpush1.msra.mxu0 0.0
        %964 = vmatprep.mubr.f32.mxu0 0.0
        %965 = vmatmul.mubr.f32.gmra.mrb[0].mxu0 %v898
        %v966 = vpop.f32.mrb[0].mxu0
        %v967 = vadd.f32 %v894, %v966
        %v968 = vpop.f32.mrb[0].mxu0
        %969 = vdwg.mxu0
        %v970 = vld [vmem:[#allocation8] sm:$0xff]
        %v971 = vld [vmem:[#allocation8 + $0x8] sm:$0xff]
        %v972 = vld [vmem:[#allocation8 + $0x10] sm:$0xff]
        %v973 = vld [vmem:[#allocation8 + $0x18] sm:$0xff]
        %v974 = vld [vmem:[#allocation10] sm:$0x1]
        %v975 = vld [vmem:[#allocation11] sm:$0xff]
        %v976 = vld [vmem:[#allocation11 + $0x8] sm:$0xff]
        %v977 = vld [vmem:[#allocation11 + $0x10] sm:$0xff]
        %v978 = vld [vmem:[#allocation11 + $0x18] sm:$0xff]
        %v979 = vld [vmem:[#allocation13] sm:$0x1]
        %v980 = vld [vmem:[#allocation14] sm:$0xff]
        %v981 = vld [vmem:[#allocation14 + $0x8] sm:$0xff]
        %v982 = vld [vmem:[#allocation14 + $0x10] sm:$0xff]
        %v983 = vld [vmem:[#allocation14 + $0x18] sm:$0xff]
        %v984 = vld [vmem:[#allocation16] sm:$0x1]
        %v985 = vld [vmem:[%s9] sm:$0xff]
        %v986 = vld [vmem:[%s9 + $0x8] sm:$0xff]
        %v987 = vld [vmem:[%s9 + $0x10] sm:$0xff]
        %v988 = vld [vmem:[%s9 + $0x18] sm:$0xff]
        %v989 = vld [vmem:[#allocation17] sm:$0x1]
        %v991 = vlaneseq
        %v992 = vshrl.u32 %v991, 7
        %v993 = vsub.s32 0, %v992
        %v994 = vrot.slane %v974, %v993
        %vm996 = vcmask 261120
        %v998 = vsel %vm996, %v967, 0
        %1000 = vmatprep.subr.mxu0 0.0
        %1001 = vmatpush1.msra.mxu0 %v970
        %1002 = vmatprep.subr.mxu0 0.0
        %1003 = vmatpush1.msra.mxu0 %v971
        %1004 = vmatprep.subr.mxu0 0.0
        %1005 = vmatpush1.msra.mxu0 %v972
        %1006 = vmatprep.subr.mxu0 0.0
        %1007 = vmatpush1.msra.mxu0 %v973
        %1008 = vmatprep.subr.mxu0 0.0
        %1009 = vmatpush1.msra.mxu0 0.0
        %1010 = vmatprep.subr.mxu0 0.0
        %1011 = vmatpush1.msra.mxu0 0.0
        %1012 = vmatprep.subr.mxu0 0.0
        %1013 = vmatpush1.msra.mxu0 0.0
        %1014 = vmatprep.subr.mxu0 0.0
        %1015 = vmatpush1.msra.mxu0 0.0
        %1016 = vmatprep.subr.mxu0 0.0
        %1017 = vmatpush1.msra.mxu0 0.0
        %1018 = vmatprep.subr.mxu0 0.0
        %1019 = vmatpush1.msra.mxu0 0.0
        %1020 = vmatprep.subr.mxu0 0.0
        %1021 = vmatpush1.msra.mxu0 0.0
        %1022 = vmatprep.subr.mxu0 0.0
        %1023 = vmatpush1.msra.mxu0 0.0
        %1024 = vmatprep.subr.mxu0 0.0
        %1025 = vmatpush1.msra.mxu0 0.0
        %1026 = vmatprep.subr.mxu0 0.0
        %1027 = vmatpush1.msra.mxu0 0.0
        %1028 = vmatprep.subr.mxu0 0.0
        %1029 = vmatpush1.msra.mxu0 0.0
        %1030 = vmatprep.subr.mxu0 0.0
        %1031 = vmatpush1.msra.mxu0 0.0
        %1032 = vmatprep.subr.mxu0 0.0
        %1033 = vmatpush1.msra.mxu0 0.0
        %1034 = vmatprep.subr.mxu0 0.0
        %1035 = vmatpush1.msra.mxu0 0.0
        %1036 = vmatprep.subr.mxu0 0.0
        %1037 = vmatpush1.msra.mxu0 0.0
        %1038 = vmatprep.subr.mxu0 0.0
        %1039 = vmatpush1.msra.mxu0 0.0
        %1040 = vmatprep.subr.mxu0 0.0
        %1041 = vmatpush1.msra.mxu0 0.0
        %1042 = vmatprep.subr.mxu0 0.0
        %1043 = vmatpush1.msra.mxu0 0.0
        %1044 = vmatprep.subr.mxu0 0.0
        %1045 = vmatpush1.msra.mxu0 0.0
        %1046 = vmatprep.subr.mxu0 0.0
        %1047 = vmatpush1.msra.mxu0 0.0
        %1048 = vmatprep.subr.mxu0 0.0
        %1049 = vmatpush1.msra.mxu0 0.0
        %1050 = vmatprep.subr.mxu0 0.0
        %1051 = vmatpush1.msra.mxu0 0.0
        %1052 = vmatprep.subr.mxu0 0.0
        %1053 = vmatpush1.msra.mxu0 0.0
        %1054 = vmatprep.subr.mxu0 0.0
        %1055 = vmatpush1.msra.mxu0 0.0
        %1056 = vmatprep.subr.mxu0 0.0
        %1057 = vmatpush1.msra.mxu0 0.0
        %1058 = vmatprep.subr.mxu0 0.0
        %1059 = vmatpush1.msra.mxu0 0.0
        %1060 = vmatprep.subr.mxu0 0.0
        %1061 = vmatpush1.msra.mxu0 0.0
        %1062 = vmatprep.subr.mxu0 0.0
        %1063 = vmatpush1.msra.mxu0 0.0
        %1064 = vmatprep.mubr.f32.mxu0 0.0
        %1065 = vmatmul.mubr.f32.gmra.mrb[0].mxu0 %v998
        %v1066 = vpop.f32.mrb[0].mxu0
        %v1067 = vadd.f32 %v994, %v1066
        %v1068 = vpop.f32.mrb[0].mxu0
        %1069 = vdwg.mxu0
        %v1071 = vlaneseq
        %v1072 = vshrl.u32 %v1071, 7
        %v1073 = vsub.s32 0, %v1072
        %v1074 = vrot.slane %v979, %v1073
        %1076 = vmatprep.subr.mxu0 0.0
        %1077 = vmatpush1.msra.mxu0 %v975
        %1078 = vmatprep.subr.mxu0 0.0
        %1079 = vmatpush1.msra.mxu0 %v976
        %1080 = vmatprep.subr.mxu0 0.0
        %1081 = vmatpush1.msra.mxu0 %v977
        %1082 = vmatprep.subr.mxu0 0.0
        %1083 = vmatpush1.msra.mxu0 %v978
        %1084 = vmatprep.subr.mxu0 0.0
        %1085 = vmatpush1.msra.mxu0 0.0
        %1086 = vmatprep.subr.mxu0 0.0
        %1087 = vmatpush1.msra.mxu0 0.0
        %1088 = vmatprep.subr.mxu0 0.0
        %1089 = vmatpush1.msra.mxu0 0.0
        %1090 = vmatprep.subr.mxu0 0.0
        %1091 = vmatpush1.msra.mxu0 0.0
        %1092 = vmatprep.subr.mxu0 0.0
        %1093 = vmatpush1.msra.mxu0 0.0
        %1094 = vmatprep.subr.mxu0 0.0
        %1095 = vmatpush1.msra.mxu0 0.0
        %1096 = vmatprep.subr.mxu0 0.0
        %1097 = vmatpush1.msra.mxu0 0.0
        %1098 = vmatprep.subr.mxu0 0.0
        %1099 = vmatpush1.msra.mxu0 0.0
        %1100 = vmatprep.subr.mxu0 0.0
        %1101 = vmatpush1.msra.mxu0 0.0
        %1102 = vmatprep.subr.mxu0 0.0
        %1103 = vmatpush1.msra.mxu0 0.0
        %1104 = vmatprep.subr.mxu0 0.0
        %1105 = vmatpush1.msra.mxu0 0.0
        %1106 = vmatprep.subr.mxu0 0.0
        %1107 = vmatpush1.msra.mxu0 0.0
        %1108 = vmatprep.subr.mxu0 0.0
        %1109 = vmatpush1.msra.mxu0 0.0
        %1110 = vmatprep.subr.mxu0 0.0
        %1111 = vmatpush1.msra.mxu0 0.0
        %1112 = vmatprep.subr.mxu0 0.0
        %1113 = vmatpush1.msra.mxu0 0.0
        %1114 = vmatprep.subr.mxu0 0.0
        %1115 = vmatpush1.msra.mxu0 0.0
        %1116 = vmatprep.subr.mxu0 0.0
        %1117 = vmatpush1.msra.mxu0 0.0
        %1118 = vmatprep.subr.mxu0 0.0
        %1119 = vmatpush1.msra.mxu0 0.0
        %1120 = vmatprep.subr.mxu0 0.0
        %1121 = vmatpush1.msra.mxu0 0.0
        %1122 = vmatprep.subr.mxu0 0.0
        %1123 = vmatpush1.msra.mxu0 0.0
        %1124 = vmatprep.subr.mxu0 0.0
        %1125 = vmatpush1.msra.mxu0 0.0
        %1126 = vmatprep.subr.mxu0 0.0
        %1127 = vmatpush1.msra.mxu0 0.0
        %1128 = vmatprep.subr.mxu0 0.0
        %1129 = vmatpush1.msra.mxu0 0.0
        %1130 = vmatprep.subr.mxu0 0.0
        %1131 = vmatpush1.msra.mxu0 0.0
        %1132 = vmatprep.subr.mxu0 0.0
        %1133 = vmatpush1.msra.mxu0 0.0
        %1134 = vmatprep.subr.mxu0 0.0
        %1135 = vmatpush1.msra.mxu0 0.0
        %1136 = vmatprep.subr.mxu0 0.0
        %1137 = vmatpush1.msra.mxu0 0.0
        %1138 = vmatprep.subr.mxu0 0.0
        %1139 = vmatpush1.msra.mxu0 0.0
        %1140 = vmatprep.mubr.f32.mxu0 0.0
        %1141 = vmatmul.mubr.f32.gmra.mrb[0].mxu0 %v998
        %v1142 = vpop.f32.mrb[0].mxu0
        %v1143 = vadd.f32 %v1074, %v1142
        %v1144 = vpop.f32.mrb[0].mxu0
        %1145 = vdwg.mxu0
        %v1147 = vlaneseq
        %v1148 = vshrl.u32 %v1147, 7
        %v1149 = vsub.s32 0, %v1148
        %v1150 = vrot.slane %v984, %v1149
        %1152 = vmatprep.subr.mxu0 0.0
        %1153 = vmatpush1.msra.mxu0 %v980
        %1154 = vmatprep.subr.mxu0 0.0
        %1155 = vmatpush1.msra.mxu0 %v981
        %1156 = vmatprep.subr.mxu0 0.0
        %1157 = vmatpush1.msra.mxu0 %v982
        %1158 = vmatprep.subr.mxu0 0.0
        %1159 = vmatpush1.msra.mxu0 %v983
        %1160 = vmatprep.subr.mxu0 0.0
        %1161 = vmatpush1.msra.mxu0 0.0
        %1162 = vmatprep.subr.mxu0 0.0
        %1163 = vmatpush1.msra.mxu0 0.0
        %1164 = vmatprep.subr.mxu0 0.0
        %1165 = vmatpush1.msra.mxu0 0.0
        %1166 = vmatprep.subr.mxu0 0.0
        %1167 = vmatpush1.msra.mxu0 0.0
        %1168 = vmatprep.subr.mxu0 0.0
        %1169 = vmatpush1.msra.mxu0 0.0
        %1170 = vmatprep.subr.mxu0 0.0
        %1171 = vmatpush1.msra.mxu0 0.0
        %1172 = vmatprep.subr.mxu0 0.0
        %1173 = vmatpush1.msra.mxu0 0.0
        %1174 = vmatprep.subr.mxu0 0.0
        %1175 = vmatpush1.msra.mxu0 0.0
        %1176 = vmatprep.subr.mxu0 0.0
        %1177 = vmatpush1.msra.mxu0 0.0
        %1178 = vmatprep.subr.mxu0 0.0
        %1179 = vmatpush1.msra.mxu0 0.0
        %1180 = vmatprep.subr.mxu0 0.0
        %1181 = vmatpush1.msra.mxu0 0.0
        %1182 = vmatprep.subr.mxu0 0.0
        %1183 = vmatpush1.msra.mxu0 0.0
        %1184 = vmatprep.subr.mxu0 0.0
        %1185 = vmatpush1.msra.mxu0 0.0
        %1186 = vmatprep.subr.mxu0 0.0
        %1187 = vmatpush1.msra.mxu0 0.0
        %1188 = vmatprep.subr.mxu0 0.0
        %1189 = vmatpush1.msra.mxu0 0.0
        %1190 = vmatprep.subr.mxu0 0.0
        %1191 = vmatpush1.msra.mxu0 0.0
        %1192 = vmatprep.subr.mxu0 0.0
        %1193 = vmatpush1.msra.mxu0 0.0
        %1194 = vmatprep.subr.mxu0 0.0
        %1195 = vmatpush1.msra.mxu0 0.0
        %1196 = vmatprep.subr.mxu0 0.0
        %1197 = vmatpush1.msra.mxu0 0.0
        %1198 = vmatprep.subr.mxu0 0.0
        %1199 = vmatpush1.msra.mxu0 0.0
        %1200 = vmatprep.subr.mxu0 0.0
        %1201 = vmatpush1.msra.mxu0 0.0
        %1202 = vmatprep.subr.mxu0 0.0
        %1203 = vmatpush1.msra.mxu0 0.0
        %1204 = vmatprep.subr.mxu0 0.0
        %1205 = vmatpush1.msra.mxu0 0.0
        %1206 = vmatprep.subr.mxu0 0.0
        %1207 = vmatpush1.msra.mxu0 0.0
        %1208 = vmatprep.subr.mxu0 0.0
        %1209 = vmatpush1.msra.mxu0 0.0
        %1210 = vmatprep.subr.mxu0 0.0
        %1211 = vmatpush1.msra.mxu0 0.0
        %1212 = vmatprep.subr.mxu0 0.0
        %1213 = vmatpush1.msra.mxu0 0.0
        %1214 = vmatprep.subr.mxu0 0.0
        %1215 = vmatpush1.msra.mxu0 0.0
        %1216 = vmatprep.mubr.f32.mxu0 0.0
        %1217 = vmatmul.mubr.f32.gmra.mrb[0].mxu0 %v998
        %v1218 = vpop.f32.mrb[0].mxu0
        %v1219 = vadd.f32 %v1150, %v1218
        %v1220 = vpop.f32.mrb[0].mxu0
        %1221 = vdwg.mxu0
        %v1223 = vsel %vm996, %v1067, 0
        %v1226 = vsel %vm996, %v1143, 0
        %1228 = vmatprep.subr.mxu0 0.0
        %1229 = vmatpush1.xpose.msra.mxu0 %v1226
        %1230 = vmatprep.subr.mxu0 0.0
        %1231 = vmatpush1.xpose.msra.mxu0 0.0
        %1232 = vmatprep.subr.mxu0 0.0
        %1233 = vmatpush1.xpose.msra.mxu0 0.0
        %1234 = vmatprep.subr.mxu0 0.0
        %1235 = vmatpush1.xpose.msra.mxu0 0.0
        %1236 = vmatprep.subr.mxu0 0.0
        %1237 = vmatpush1.xpose.msra.mxu0 0.0
        %1238 = vmatprep.subr.mxu0 0.0
        %1239 = vmatpush1.xpose.msra.mxu0 0.0
        %1240 = vmatprep.subr.mxu0 0.0
        %1241 = vmatpush1.xpose.msra.mxu0 0.0
        %1242 = vmatprep.subr.mxu0 0.0
        %1243 = vmatpush1.xpose.msra.mxu0 0.0
        %1244 = vmatprep.subr.mxu0 0.0
        %1245 = vmatpush1.xpose.msra.mxu0 0.0
        %1246 = vmatprep.subr.mxu0 0.0
        %1247 = vmatpush1.xpose.msra.mxu0 0.0
        %1248 = vmatprep.subr.mxu0 0.0
        %1249 = vmatpush1.xpose.msra.mxu0 0.0
        %1250 = vmatprep.subr.mxu0 0.0
        %1251 = vmatpush1.xpose.msra.mxu0 0.0
        %1252 = vmatprep.subr.mxu0 0.0
        %1253 = vmatpush1.xpose.msra.mxu0 0.0
        %1254 = vmatprep.subr.mxu0 0.0
        %1255 = vmatpush1.xpose.msra.mxu0 0.0
        %1256 = vmatprep.subr.mxu0 0.0
        %1257 = vmatpush1.xpose.msra.mxu0 0.0
        %1258 = vmatprep.subr.mxu0 0.0
        %1259 = vmatpush1.xpose.msra.mxu0 0.0
        %1260 = vmatprep.subr.mxu0 0.0
        %1261 = vmatpush1.xpose.msra.mxu0 0.0
        %1262 = vmatprep.subr.mxu0 0.0
        %1263 = vmatpush1.xpose.msra.mxu0 0.0
        %1264 = vmatprep.subr.mxu0 0.0
        %1265 = vmatpush1.xpose.msra.mxu0 0.0
        %1266 = vmatprep.subr.mxu0 0.0
        %1267 = vmatpush1.xpose.msra.mxu0 0.0
        %1268 = vmatprep.subr.mxu0 0.0
        %1269 = vmatpush1.xpose.msra.mxu0 0.0
        %1270 = vmatprep.subr.mxu0 0.0
        %1271 = vmatpush1.xpose.msra.mxu0 0.0
        %1272 = vmatprep.subr.mxu0 0.0
        %1273 = vmatpush1.xpose.msra.mxu0 0.0
        %1274 = vmatprep.subr.mxu0 0.0
        %1275 = vmatpush1.xpose.msra.mxu0 0.0
        %1276 = vmatprep.subr.mxu0 0.0
        %1277 = vmatpush1.xpose.msra.mxu0 0.0
        %1278 = vmatprep.subr.mxu0 0.0
        %1279 = vmatpush1.xpose.msra.mxu0 0.0
        %1280 = vmatprep.subr.mxu0 0.0
        %1281 = vmatpush1.xpose.msra.mxu0 0.0
        %1282 = vmatprep.subr.mxu0 0.0
        %1283 = vmatpush1.xpose.msra.mxu0 0.0
        %1284 = vmatprep.subr.mxu0 0.0
        %1285 = vmatpush1.xpose.msra.mxu0 0.0
        %1286 = vmatprep.subr.mxu0 0.0
        %1287 = vmatpush1.xpose.msra.mxu0 0.0
        %1288 = vmatprep.subr.mxu0 0.0
        %1289 = vmatpush1.xpose.msra.mxu0 0.0
        %1290 = vmatprep.subr.mxu0 0.0
        %1291 = vmatpush1.xpose.msra.mxu0 0.0
        %1292 = vmatprep.mubr.f32.mxu0 0.0
        %1293 = vmatmul.mubr.f32.gmra.mrb[0].mxu0 %v1223
        %v1294 = vpop.f32.mrb[0].mxu0
        %v1295 = vadd.f32 0.0, %v1294
        %v1296 = vpop.f32.mrb[0].mxu0
        %1297 = vdwg.mxu0
        %vm1298 = vcmask 64512
        %v1299 = vsel %vm1298, %v1295, -inf
        %1300 = vmax.xlane.f32.xlu0 %v1299
        %v1301 = vpop.xlane.xlu0 %1300
        %v1302 = vsub.f32 %v1295, %v1301
        %v1303 = vmul.f32 %v1302, 1.442695
        %v1304 = vpow.pop %v1303
        %v1305 = vsel %vm1298, %v1304, 0.0
        %1306 = vadd.xlane.f32.xlu0 %v1305
        %v1307 = vpop.xlane.xlu0 %1306
        %v1308 = vrcp.pop %v1307
        %v1309 = vmul.f32 %v1307, %v1308
        %v1310 = vsub.f32 2.0, %v1309
        %v1311 = vmul.f32 %v1308, %v1310
        %v1312 = vmul.f32 %v1304, %v1311
        %v1314 = vsel %vm1298, %v1312, 0
        %1316 = vmatprep.subr.mxu0 0.0
        %1317 = vmatpush1.msra.mxu0 %v1219
        %1318 = vmatprep.subr.mxu0 0.0
        %1319 = vmatpush1.msra.mxu0 0.0
        %1320 = vmatprep.subr.mxu0 0.0
        %1321 = vmatpush1.msra.mxu0 0.0
        %1322 = vmatprep.subr.mxu0 0.0
        %1323 = vmatpush1.msra.mxu0 0.0
        %1324 = vmatprep.subr.mxu0 0.0
        %1325 = vmatpush1.msra.mxu0 0.0
        %1326 = vmatprep.subr.mxu0 0.0
        %1327 = vmatpush1.msra.mxu0 0.0
        %1328 = vmatprep.subr.mxu0 0.0
        %1329 = vmatpush1.msra.mxu0 0.0
        %1330 = vmatprep.subr.mxu0 0.0
        %1331 = vmatpush1.msra.mxu0 0.0
        %1332 = vmatprep.subr.mxu0 0.0
        %1333 = vmatpush1.msra.mxu0 0.0
        %1334 = vmatprep.subr.mxu0 0.0
        %1335 = vmatpush1.msra.mxu0 0.0
        %1336 = vmatprep.subr.mxu0 0.0
        %1337 = vmatpush1.msra.mxu0 0.0
        %1338 = vmatprep.subr.mxu0 0.0
        %1339 = vmatpush1.msra.mxu0 0.0
        %1340 = vmatprep.subr.mxu0 0.0
        %1341 = vmatpush1.msra.mxu0 0.0
        %1342 = vmatprep.subr.mxu0 0.0
        %1343 = vmatpush1.msra.mxu0 0.0
        %1344 = vmatprep.subr.mxu0 0.0
        %1345 = vmatpush1.msra.mxu0 0.0
        %1346 = vmatprep.subr.mxu0 0.0
        %1347 = vmatpush1.msra.mxu0 0.0
        %1348 = vmatprep.subr.mxu0 0.0
        %1349 = vmatpush1.msra.mxu0 0.0
        %1350 = vmatprep.subr.mxu0 0.0
        %1351 = vmatpush1.msra.mxu0 0.0
        %1352 = vmatprep.subr.mxu0 0.0
        %1353 = vmatpush1.msra.mxu0 0.0
        %1354 = vmatprep.subr.mxu0 0.0
        %1355 = vmatpush1.msra.mxu0 0.0
        %1356 = vmatprep.subr.mxu0 0.0
        %1357 = vmatpush1.msra.mxu0 0.0
        %1358 = vmatprep.subr.mxu0 0.0
        %1359 = vmatpush1.msra.mxu0 0.0
        %1360 = vmatprep.subr.mxu0 0.0
        %1361 = vmatpush1.msra.mxu0 0.0
        %1362 = vmatprep.subr.mxu0 0.0
        %1363 = vmatpush1.msra.mxu0 0.0
        %1364 = vmatprep.subr.mxu0 0.0
        %1365 = vmatpush1.msra.mxu0 0.0
        %1366 = vmatprep.subr.mxu0 0.0
        %1367 = vmatpush1.msra.mxu0 0.0
        %1368 = vmatprep.subr.mxu0 0.0
        %1369 = vmatpush1.msra.mxu0 0.0
        %1370 = vmatprep.subr.mxu0 0.0
        %1371 = vmatpush1.msra.mxu0 0.0
        %1372 = vmatprep.subr.mxu0 0.0
        %1373 = vmatpush1.msra.mxu0 0.0
        %1374 = vmatprep.subr.mxu0 0.0
        %1375 = vmatpush1.msra.mxu0 0.0
        %1376 = vmatprep.subr.mxu0 0.0
        %1377 = vmatpush1.msra.mxu0 0.0
        %1378 = vmatprep.subr.mxu0 0.0
        %1379 = vmatpush1.msra.mxu0 0.0
        %1380 = vmatprep.mubr.f32.mxu0 0.0
        %1381 = vmatmul.mubr.f32.gmra.mrb[0].mxu0 %v1314
        %v1382 = vpop.f32.mrb[0].mxu0
        %v1383 = vadd.f32 0.0, %v1382
        %v1384 = vpop.f32.mrb[0].mxu0
        %1385 = vdwg.mxu0
        %v1387 = vlaneseq
        %v1388 = vshrl.u32 %v1387, 7
        %v1389 = vsub.s32 0, %v1388
        %v1390 = vrot.slane %v989, %v1389
        %v1393 = vsel %vm996, %v1383, 0
        %1395 = vmatprep.subr.mxu0 0.0
        %1396 = vmatpush1.msra.mxu0 %v985
        %1397 = vmatprep.subr.mxu0 0.0
        %1398 = vmatpush1.msra.mxu0 %v986
        %1399 = vmatprep.subr.mxu0 0.0
        %1400 = vmatpush1.msra.mxu0 %v987
        %1401 = vmatprep.subr.mxu0 0.0
        %1402 = vmatpush1.msra.mxu0 %v988
        %1403 = vmatprep.subr.mxu0 0.0
        %1404 = vmatpush1.msra.mxu0 0.0
        %1405 = vmatprep.subr.mxu0 0.0
        %1406 = vmatpush1.msra.mxu0 0.0
        %1407 = vmatprep.subr.mxu0 0.0
        %1408 = vmatpush1.msra.mxu0 0.0
        %1409 = vmatprep.subr.mxu0 0.0
        %1410 = vmatpush1.msra.mxu0 0.0
        %1411 = vmatprep.subr.mxu0 0.0
        %1412 = vmatpush1.msra.mxu0 0.0
        %1413 = vmatprep.subr.mxu0 0.0
        %1414 = vmatpush1.msra.mxu0 0.0
        %1415 = vmatprep.subr.mxu0 0.0
        %1416 = vmatpush1.msra.mxu0 0.0
        %1417 = vmatprep.subr.mxu0 0.0
        %1418 = vmatpush1.msra.mxu0 0.0
        %1419 = vmatprep.subr.mxu0 0.0
        %1420 = vmatpush1.msra.mxu0 0.0
        %1421 = vmatprep.subr.mxu0 0.0
        %1422 = vmatpush1.msra.mxu0 0.0
        %1423 = vmatprep.subr.mxu0 0.0
        %1424 = vmatpush1.msra.mxu0 0.0
        %1425 = vmatprep.subr.mxu0 0.0
        %1426 = vmatpush1.msra.mxu0 0.0
        %1427 = vmatprep.subr.mxu0 0.0
        %1428 = vmatpush1.msra.mxu0 0.0
        %1429 = vmatprep.subr.mxu0 0.0
        %1430 = vmatpush1.msra.mxu0 0.0
        %1431 = vmatprep.subr.mxu0 0.0
        %1432 = vmatpush1.msra.mxu0 0.0
        %1433 = vmatprep.subr.mxu0 0.0
        %1434 = vmatpush1.msra.mxu0 0.0
        %1435 = vmatprep.subr.mxu0 0.0
        %1436 = vmatpush1.msra.mxu0 0.0
        %1437 = vmatprep.subr.mxu0 0.0
        %1438 = vmatpush1.msra.mxu0 0.0
        %1439 = vmatprep.subr.mxu0 0.0
        %1440 = vmatpush1.msra.mxu0 0.0
        %1441 = vmatprep.subr.mxu0 0.0
        %1442 = vmatpush1.msra.mxu0 0.0
        %1443 = vmatprep.subr.mxu0 0.0
        %1444 = vmatpush1.msra.mxu0 0.0
        %1445 = vmatprep.subr.mxu0 0.0
        %1446 = vmatpush1.msra.mxu0 0.0
        %1447 = vmatprep.subr.mxu0 0.0
        %1448 = vmatpush1.msra.mxu0 0.0
        %1449 = vmatprep.subr.mxu0 0.0
        %1450 = vmatpush1.msra.mxu0 0.0
        %1451 = vmatprep.subr.mxu0 0.0
        %1452 = vmatpush1.msra.mxu0 0.0
        %1453 = vmatprep.subr.mxu0 0.0
        %1454 = vmatpush1.msra.mxu0 0.0
        %1455 = vmatprep.subr.mxu0 0.0
        %1456 = vmatpush1.msra.mxu0 0.0
        %1457 = vmatprep.subr.mxu0 0.0
        %1458 = vmatpush1.msra.mxu0 0.0
        %1459 = vmatprep.mubr.f32.mxu0 0.0
        %1460 = vmatmul.mubr.f32.gmra.mrb[0].mxu0 %v1393
        %v1461 = vpop.f32.mrb[0].mxu0
        %v1462 = vadd.f32 %v1390, %v1461
        %v1463 = vpop.f32.mrb[0].mxu0
        %1464 = vdwg.mxu0
        %v1465 = vld [vmem:[#allocation19] sm:$0xff]
        %v1466 = vld [vmem:[#allocation20] sm:$0x1]
        %v1468 = vlaneseq
        %v1469 = vshrl.u32 %v1468, 7
        %v1470 = vsub.s32 0, %v1469
        %v1471 = vrot.slane %v1466, %v1470
        %1473 = vxpose.xlu0.b32.start [1/16] %v1462, 128
        %1474 = vxpose.xlu0.b32.cont [2/16] 0.0, 128
        %1475 = vxpose.xlu0.b32.cont [3/16] 0.0, 128
        %1476 = vxpose.xlu0.b32.cont [4/16] 0.0, 128
        %1477 = vxpose.xlu0.b32.cont [5/16] 0.0, 128
        %1478 = vxpose.xlu0.b32.cont [6/16] 0.0, 128
        %1479 = vxpose.xlu0.b32.cont [7/16] 0.0, 128
        %1480 = vxpose.xlu0.b32.cont [8/16] 0.0, 128
        %1481 = vxpose.xlu0.b32.cont [9/16] 0.0, 128
        %1482 = vxpose.xlu0.b32.cont [10/16] 0.0, 128
        %1483 = vxpose.xlu0.b32.cont [11/16] 0.0, 128
        %1484 = vxpose.xlu0.b32.cont [12/16] 0.0, 128
        %1485 = vxpose.xlu0.b32.cont [13/16] 0.0, 128
        %1486 = vxpose.xlu0.b32.cont [14/16] 0.0, 128
        %1487 = vxpose.xlu0.b32.cont [15/16] 0.0, 128
        %1488 = vxpose.xlu0.b32.end [16/16] 0.0, 128
        %v1489 = vpop.trf.xlu0
        %v1490 = vpop.trf.xlu0
        %v1491 = vpop.trf.xlu0
        %v1492 = vpop.trf.xlu0
        %v1493 = vpop.trf.xlu0
        %v1494 = vpop.trf.xlu0
        %v1495 = vpop.trf.xlu0
        %v1496 = vpop.trf.xlu0
        %v1497 = vpop.trf.xlu0
        %v1498 = vpop.trf.xlu0
        %v1499 = vpop.trf.xlu0
        %v1500 = vpop.trf.xlu0
        %v1501 = vpop.trf.xlu0
        %v1502 = vpop.trf.xlu0
        %v1503 = vpop.trf.xlu0
        %v1504 = vpop.trf.xlu0
        %v1506 = vsel %vm1298, %v1489, 0
        %v1509 = vsel %vm1298, %v1490, 0
        %v1512 = vsel %vm1298, %v1491, 0
        %v1515 = vsel %vm1298, %v1492, 0
        %1517 = vmatprep.subr.mxu0 0.0
        %1518 = vmatpush1.msra.mxu0 %v1465
        %1519 = vmatprep.subr.mxu0 0.0
        %1520 = vmatpush1.msra.mxu0 0.0
        %1521 = vmatprep.subr.mxu0 0.0
        %1522 = vmatpush1.msra.mxu0 0.0
        %1523 = vmatprep.subr.mxu0 0.0
        %1524 = vmatpush1.msra.mxu0 0.0
        %1525 = vmatprep.subr.mxu0 0.0
        %1526 = vmatpush1.msra.mxu0 0.0
        %1527 = vmatprep.subr.mxu0 0.0
        %1528 = vmatpush1.msra.mxu0 0.0
        %1529 = vmatprep.subr.mxu0 0.0
        %1530 = vmatpush1.msra.mxu0 0.0
        %1531 = vmatprep.subr.mxu0 0.0
        %1532 = vmatpush1.msra.mxu0 0.0
        %1533 = vmatprep.subr.mxu0 0.0
        %1534 = vmatpush1.msra.mxu0 0.0
        %1535 = vmatprep.subr.mxu0 0.0
        %1536 = vmatpush1.msra.mxu0 0.0
        %1537 = vmatprep.subr.mxu0 0.0
        %1538 = vmatpush1.msra.mxu0 0.0
        %1539 = vmatprep.subr.mxu0 0.0
        %1540 = vmatpush1.msra.mxu0 0.0
        %1541 = vmatprep.subr.mxu0 0.0
        %1542 = vmatpush1.msra.mxu0 0.0
        %1543 = vmatprep.subr.mxu0 0.0
        %1544 = vmatpush1.msra.mxu0 0.0
        %1545 = vmatprep.subr.mxu0 0.0
        %1546 = vmatpush1.msra.mxu0 0.0
        %1547 = vmatprep.subr.mxu0 0.0
        %1548 = vmatpush1.msra.mxu0 0.0
        %1549 = vmatprep.subr.mxu0 0.0
        %1550 = vmatpush1.msra.mxu0 0.0
        %1551 = vmatprep.subr.mxu0 0.0
        %1552 = vmatpush1.msra.mxu0 0.0
        %1553 = vmatprep.subr.mxu0 0.0
        %1554 = vmatpush1.msra.mxu0 0.0
        %1555 = vmatprep.subr.mxu0 0.0
        %1556 = vmatpush1.msra.mxu0 0.0
        %1557 = vmatprep.subr.mxu0 0.0
        %1558 = vmatpush1.msra.mxu0 0.0
        %1559 = vmatprep.subr.mxu0 0.0
        %1560 = vmatpush1.msra.mxu0 0.0
        %1561 = vmatprep.subr.mxu0 0.0
        %1562 = vmatpush1.msra.mxu0 0.0
        %1563 = vmatprep.subr.mxu0 0.0
        %1564 = vmatpush1.msra.mxu0 0.0
        %1565 = vmatprep.subr.mxu0 0.0
        %1566 = vmatpush1.msra.mxu0 0.0
        %1567 = vmatprep.subr.mxu0 0.0
        %1568 = vmatpush1.msra.mxu0 0.0
        %1569 = vmatprep.subr.mxu0 0.0
        %1570 = vmatpush1.msra.mxu0 0.0
        %1571 = vmatprep.subr.mxu0 0.0
        %1572 = vmatpush1.msra.mxu0 0.0
        %1573 = vmatprep.subr.mxu0 0.0
        %1574 = vmatpush1.msra.mxu0 0.0
        %1575 = vmatprep.subr.mxu0 0.0
        %1576 = vmatpush1.msra.mxu0 0.0
        %1577 = vmatprep.subr.mxu0 0.0
        %1578 = vmatpush1.msra.mxu0 0.0
        %1579 = vmatprep.subr.mxu0 0.0
        %1580 = vmatpush1.msra.mxu0 0.0
        %1581 = vmatprep.mubr.f32.mxu0 0.0
        %1582 = vmatmul.mubr.f32.gmra.mrb[0].mxu0 %v1506
        %v1583 = vpop.f32.mrb[0].mxu0
        %v1584 = vadd.f32 %v1471, %v1583
        %v1585 = vpop.f32.mrb[0].mxu0
        %1586 = vmatprep.mubr.f32.mxu0 0.0
        %1587 = vmatmul.mubr.f32.gmra.mrb[0].mxu0 %v1509
        %v1588 = vpop.f32.mrb[0].mxu0
        %v1589 = vadd.f32 %v1471, %v1588
        %v1590 = vpop.f32.mrb[0].mxu0
        %1591 = vmatprep.mubr.f32.mxu0 0.0
        %1592 = vmatmul.mubr.f32.gmra.mrb[0].mxu0 %v1512
        %v1593 = vpop.f32.mrb[0].mxu0
        %v1594 = vadd.f32 %v1471, %v1593
        %v1595 = vpop.f32.mrb[0].mxu0
        %1596 = vmatprep.mubr.f32.mxu0 0.0
        %1597 = vmatmul.mubr.f32.gmra.mrb[0].mxu0 %v1515
        %v1598 = vpop.f32.mrb[0].mxu0
        %v1599 = vadd.f32 %v1471, %v1598
        %v1600 = vpop.f32.mrb[0].mxu0
        %1601 = vdwg.mxu0
        %v1602 = vld [vmem:[#allocation22] sm:$0xff]
        %v1603 = vld [vmem:[#allocation22 + $0x8] sm:$0xff]
        %v1604 = vld [vmem:[#allocation22 + $0x10] sm:$0xff]
        %v1605 = vld [vmem:[#allocation22 + $0x18] sm:$0xff]
        %v1606 = vld [vmem:[#allocation23] sm:$0x1]
        %v1607 = vld [vmem:[#allocation25] sm:$0xff]
        %v1608 = vld [vmem:[#allocation25 + $0x8] sm:$0xff]
        %v1609 = vld [vmem:[#allocation25 + $0x10] sm:$0xff]
        %v1610 = vld [vmem:[#allocation25 + $0x18] sm:$0xff]
        %v1611 = vld [vmem:[#allocation26] sm:$0x1]
        %v1612 = vld [vmem:[%s17] sm:$0xff]
        %v1613 = vld [vmem:[%s17 + $0x8] sm:$0xff]
        %v1614 = vld [vmem:[%s17 + $0x10] sm:$0xff]
        %v1615 = vld [vmem:[%s17 + $0x18] sm:$0xff]
        %v1616 = vld [vmem:[%s18] sm:$0x1]
        %v1617 = vld [vmem:[#allocation28] sm:$0xff]
        %v1618 = vld [vmem:[#allocation28 + $0x8] sm:$0xff]
        %v1619 = vld [vmem:[#allocation28 + $0x10] sm:$0xff]
        %v1620 = vld [vmem:[#allocation28 + $0x18] sm:$0xff]
        %v1621 = vld [vmem:[%s20] sm:$0x1]
        %v1623 = vlaneseq
        %v1624 = vshrl.u32 %v1623, 7
        %v1625 = vsub.s32 0, %v1624
        %v1626 = vrot.slane %v1606, %v1625
        %v1629 = vsel %vm996, %v1584, 0
        %v1632 = vsel %vm996, %v1589, 0
        %v1635 = vsel %vm996, %v1594, 0
        %v1638 = vsel %vm996, %v1599, 0
        %1640 = vmatprep.subr.mxu0 0.0
        %1641 = vmatpush1.msra.mxu0 %v1602
        %1642 = vmatprep.subr.mxu0 0.0
        %1643 = vmatpush1.msra.mxu0 %v1603
        %1644 = vmatprep.subr.mxu0 0.0
        %1645 = vmatpush1.msra.mxu0 %v1604
        %1646 = vmatprep.subr.mxu0 0.0
        %1647 = vmatpush1.msra.mxu0 %v1605
        %1648 = vmatprep.subr.mxu0 0.0
        %1649 = vmatpush1.msra.mxu0 0.0
        %1650 = vmatprep.subr.mxu0 0.0
        %1651 = vmatpush1.msra.mxu0 0.0
        %1652 = vmatprep.subr.mxu0 0.0
        %1653 = vmatpush1.msra.mxu0 0.0
        %1654 = vmatprep.subr.mxu0 0.0
        %1655 = vmatpush1.msra.mxu0 0.0
        %1656 = vmatprep.subr.mxu0 0.0
        %1657 = vmatpush1.msra.mxu0 0.0
        %1658 = vmatprep.subr.mxu0 0.0
        %1659 = vmatpush1.msra.mxu0 0.0
        %1660 = vmatprep.subr.mxu0 0.0
        %1661 = vmatpush1.msra.mxu0 0.0
        %1662 = vmatprep.subr.mxu0 0.0
        %1663 = vmatpush1.msra.mxu0 0.0
        %1664 = vmatprep.subr.mxu0 0.0
        %1665 = vmatpush1.msra.mxu0 0.0
        %1666 = vmatprep.subr.mxu0 0.0
        %1667 = vmatpush1.msra.mxu0 0.0
        %1668 = vmatprep.subr.mxu0 0.0
        %1669 = vmatpush1.msra.mxu0 0.0
        %1670 = vmatprep.subr.mxu0 0.0
        %1671 = vmatpush1.msra.mxu0 0.0
        %1672 = vmatprep.subr.mxu0 0.0
        %1673 = vmatpush1.msra.mxu0 0.0
        %1674 = vmatprep.subr.mxu0 0.0
        %1675 = vmatpush1.msra.mxu0 0.0
        %1676 = vmatprep.subr.mxu0 0.0
        %1677 = vmatpush1.msra.mxu0 0.0
        %1678 = vmatprep.subr.mxu0 0.0
        %1679 = vmatpush1.msra.mxu0 0.0
        %1680 = vmatprep.subr.mxu0 0.0
        %1681 = vmatpush1.msra.mxu0 0.0
        %1682 = vmatprep.subr.mxu0 0.0
        %1683 = vmatpush1.msra.mxu0 0.0
        %1684 = vmatprep.subr.mxu0 0.0
        %1685 = vmatpush1.msra.mxu0 0.0
        %1686 = vmatprep.subr.mxu0 0.0
        %1687 = vmatpush1.msra.mxu0 0.0
        %1688 = vmatprep.subr.mxu0 0.0
        %1689 = vmatpush1.msra.mxu0 0.0
        %1690 = vmatprep.subr.mxu0 0.0
        %1691 = vmatpush1.msra.mxu0 0.0
        %1692 = vmatprep.subr.mxu0 0.0
        %1693 = vmatpush1.msra.mxu0 0.0
        %1694 = vmatprep.subr.mxu0 0.0
        %1695 = vmatpush1.msra.mxu0 0.0
        %1696 = vmatprep.subr.mxu0 0.0
        %1697 = vmatpush1.msra.mxu0 0.0
        %1698 = vmatprep.subr.mxu0 0.0
        %1699 = vmatpush1.msra.mxu0 0.0
        %1700 = vmatprep.subr.mxu0 0.0
        %1701 = vmatpush1.msra.mxu0 0.0
        %1702 = vmatprep.subr.mxu0 0.0
        %1703 = vmatpush1.msra.mxu0 0.0
        %1704 = vmatprep.mubr.f32.mxu0 0.0
        %1705 = vmatmul.mubr.f32.gmra.mrb[0].mxu0 %v1629
        %v1706 = vpop.f32.mrb[0].mxu0
        %v1707 = vadd.f32 %v1626, %v1706
        %v1708 = vpop.f32.mrb[0].mxu0
        %1709 = vmatprep.mubr.f32.mxu0 0.0
        %1710 = vmatmul.mubr.f32.gmra.mrb[0].mxu0 %v1632
        %v1711 = vpop.f32.mrb[0].mxu0
        %v1712 = vadd.f32 %v1626, %v1711
        %v1713 = vpop.f32.mrb[0].mxu0
        %1714 = vmatprep.mubr.f32.mxu0 0.0
        %1715 = vmatmul.mubr.f32.gmra.mrb[0].mxu0 %v1635
        %v1716 = vpop.f32.mrb[0].mxu0
        %v1717 = vadd.f32 %v1626, %v1716
        %v1718 = vpop.f32.mrb[0].mxu0
        %1719 = vmatprep.mubr.f32.mxu0 0.0
        %1720 = vmatmul.mubr.f32.gmra.mrb[0].mxu0 %v1638
        %v1721 = vpop.f32.mrb[0].mxu0
        %v1722 = vadd.f32 %v1626, %v1721
        %v1723 = vpop.f32.mrb[0].mxu0
        %1724 = vdwg.mxu0
        %v1726 = vlaneseq
        %v1727 = vshrl.u32 %v1726, 7
        %v1728 = vsub.s32 0, %v1727
        %v1729 = vrot.slane %v1611, %v1728
        %1731 = vmatprep.subr.mxu0 0.0
        %1732 = vmatpush1.msra.mxu0 %v1607
        %1733 = vmatprep.subr.mxu0 0.0
        %1734 = vmatpush1.msra.mxu0 %v1608
        %1735 = vmatprep.subr.mxu0 0.0
        %1736 = vmatpush1.msra.mxu0 %v1609
        %1737 = vmatprep.subr.mxu0 0.0
        %1738 = vmatpush1.msra.mxu0 %v1610
        %1739 = vmatprep.subr.mxu0 0.0
        %1740 = vmatpush1.msra.mxu0 0.0
        %1741 = vmatprep.subr.mxu0 0.0
        %1742 = vmatpush1.msra.mxu0 0.0
        %1743 = vmatprep.subr.mxu0 0.0
        %1744 = vmatpush1.msra.mxu0 0.0
        %1745 = vmatprep.subr.mxu0 0.0
        %1746 = vmatpush1.msra.mxu0 0.0
        %1747 = vmatprep.subr.mxu0 0.0
        %1748 = vmatpush1.msra.mxu0 0.0
        %1749 = vmatprep.subr.mxu0 0.0
        %1750 = vmatpush1.msra.mxu0 0.0
        %1751 = vmatprep.subr.mxu0 0.0
        %1752 = vmatpush1.msra.mxu0 0.0
        %1753 = vmatprep.subr.mxu0 0.0
        %1754 = vmatpush1.msra.mxu0 0.0
        %1755 = vmatprep.subr.mxu0 0.0
        %1756 = vmatpush1.msra.mxu0 0.0
        %1757 = vmatprep.subr.mxu0 0.0
        %1758 = vmatpush1.msra.mxu0 0.0
        %1759 = vmatprep.subr.mxu0 0.0
        %1760 = vmatpush1.msra.mxu0 0.0
        %1761 = vmatprep.subr.mxu0 0.0
        %1762 = vmatpush1.msra.mxu0 0.0
        %1763 = vmatprep.subr.mxu0 0.0
        %1764 = vmatpush1.msra.mxu0 0.0
        %1765 = vmatprep.subr.mxu0 0.0
        %1766 = vmatpush1.msra.mxu0 0.0
        %1767 = vmatprep.subr.mxu0 0.0
        %1768 = vmatpush1.msra.mxu0 0.0
        %1769 = vmatprep.subr.mxu0 0.0
        %1770 = vmatpush1.msra.mxu0 0.0
        %1771 = vmatprep.subr.mxu0 0.0
        %1772 = vmatpush1.msra.mxu0 0.0
        %1773 = vmatprep.subr.mxu0 0.0
        %1774 = vmatpush1.msra.mxu0 0.0
        %1775 = vmatprep.subr.mxu0 0.0
        %1776 = vmatpush1.msra.mxu0 0.0
        %1777 = vmatprep.subr.mxu0 0.0
        %1778 = vmatpush1.msra.mxu0 0.0
        %1779 = vmatprep.subr.mxu0 0.0
        %1780 = vmatpush1.msra.mxu0 0.0
        %1781 = vmatprep.subr.mxu0 0.0
        %1782 = vmatpush1.msra.mxu0 0.0
        %1783 = vmatprep.subr.mxu0 0.0
        %1784 = vmatpush1.msra.mxu0 0.0
        %1785 = vmatprep.subr.mxu0 0.0
        %1786 = vmatpush1.msra.mxu0 0.0
        %1787 = vmatprep.subr.mxu0 0.0
        %1788 = vmatpush1.msra.mxu0 0.0
        %1789 = vmatprep.subr.mxu0 0.0
        %1790 = vmatpush1.msra.mxu0 0.0
        %1791 = vmatprep.subr.mxu0 0.0
        %1792 = vmatpush1.msra.mxu0 0.0
        %1793 = vmatprep.subr.mxu0 0.0
        %1794 = vmatpush1.msra.mxu0 0.0
        %1795 = vmatprep.mubr.f32.mxu0 0.0
        %1796 = vmatmul.mubr.f32.gmra.mrb[0].mxu0 %v1629
        %v1797 = vpop.f32.mrb[0].mxu0
        %v1798 = vadd.f32 %v1729, %v1797
        %v1799 = vpop.f32.mrb[0].mxu0
        %1800 = vmatprep.mubr.f32.mxu0 0.0
        %1801 = vmatmul.mubr.f32.gmra.mrb[0].mxu0 %v1632
        %v1802 = vpop.f32.mrb[0].mxu0
        %v1803 = vadd.f32 %v1729, %v1802
        %v1804 = vpop.f32.mrb[0].mxu0
        %1805 = vmatprep.mubr.f32.mxu0 0.0
        %1806 = vmatmul.mubr.f32.gmra.mrb[0].mxu0 %v1635
        %v1807 = vpop.f32.mrb[0].mxu0
        %v1808 = vadd.f32 %v1729, %v1807
        %v1809 = vpop.f32.mrb[0].mxu0
        %1810 = vmatprep.mubr.f32.mxu0 0.0
        %1811 = vmatmul.mubr.f32.gmra.mrb[0].mxu0 %v1638
        %v1812 = vpop.f32.mrb[0].mxu0
        %v1813 = vadd.f32 %v1729, %v1812
        %v1814 = vpop.f32.mrb[0].mxu0
        %1815 = vdwg.mxu0
        %v1817 = vlaneseq
        %v1818 = vshrl.u32 %v1817, 7
        %v1819 = vsub.s32 0, %v1818
        %v1820 = vrot.slane %v1616, %v1819
        %1822 = vmatprep.subr.mxu0 0.0
        %1823 = vmatpush1.msra.mxu0 %v1612
        %1824 = vmatprep.subr.mxu0 0.0
        %1825 = vmatpush1.msra.mxu0 %v1613
        %1826 = vmatprep.subr.mxu0 0.0
        %1827 = vmatpush1.msra.mxu0 %v1614
        %1828 = vmatprep.subr.mxu0 0.0
        %1829 = vmatpush1.msra.mxu0 %v1615
        %1830 = vmatprep.subr.mxu0 0.0
        %1831 = vmatpush1.msra.mxu0 0.0
        %1832 = vmatprep.subr.mxu0 0.0
        %1833 = vmatpush1.msra.mxu0 0.0
        %1834 = vmatprep.subr.mxu0 0.0
        %1835 = vmatpush1.msra.mxu0 0.0
        %1836 = vmatprep.subr.mxu0 0.0
        %1837 = vmatpush1.msra.mxu0 0.0
        %1838 = vmatprep.subr.mxu0 0.0
        %1839 = vmatpush1.msra.mxu0 0.0
        %1840 = vmatprep.subr.mxu0 0.0
        %1841 = vmatpush1.msra.mxu0 0.0
        %1842 = vmatprep.subr.mxu0 0.0
        %1843 = vmatpush1.msra.mxu0 0.0
        %1844 = vmatprep.subr.mxu0 0.0
        %1845 = vmatpush1.msra.mxu0 0.0
        %1846 = vmatprep.subr.mxu0 0.0
        %1847 = vmatpush1.msra.mxu0 0.0
        %1848 = vmatprep.subr.mxu0 0.0
        %1849 = vmatpush1.msra.mxu0 0.0
        %1850 = vmatprep.subr.mxu0 0.0
        %1851 = vmatpush1.msra.mxu0 0.0
        %1852 = vmatprep.subr.mxu0 0.0
        %1853 = vmatpush1.msra.mxu0 0.0
        %1854 = vmatprep.subr.mxu0 0.0
        %1855 = vmatpush1.msra.mxu0 0.0
        %1856 = vmatprep.subr.mxu0 0.0
        %1857 = vmatpush1.msra.mxu0 0.0
        %1858 = vmatprep.subr.mxu0 0.0
        %1859 = vmatpush1.msra.mxu0 0.0
        %1860 = vmatprep.subr.mxu0 0.0
        %1861 = vmatpush1.msra.mxu0 0.0
        %1862 = vmatprep.subr.mxu0 0.0
        %1863 = vmatpush1.msra.mxu0 0.0
        %1864 = vmatprep.subr.mxu0 0.0
        %1865 = vmatpush1.msra.mxu0 0.0
        %1866 = vmatprep.subr.mxu0 0.0
        %1867 = vmatpush1.msra.mxu0 0.0
        %1868 = vmatprep.subr.mxu0 0.0
        %1869 = vmatpush1.msra.mxu0 0.0
        %1870 = vmatprep.subr.mxu0 0.0
        %1871 = vmatpush1.msra.mxu0 0.0
        %1872 = vmatprep.subr.mxu0 0.0
        %1873 = vmatpush1.msra.mxu0 0.0
        %1874 = vmatprep.subr.mxu0 0.0
        %1875 = vmatpush1.msra.mxu0 0.0
        %1876 = vmatprep.subr.mxu0 0.0
        %1877 = vmatpush1.msra.mxu0 0.0
        %1878 = vmatprep.subr.mxu0 0.0
        %1879 = vmatpush1.msra.mxu0 0.0
        %1880 = vmatprep.subr.mxu0 0.0
        %1881 = vmatpush1.msra.mxu0 0.0
        %1882 = vmatprep.subr.mxu0 0.0
        %1883 = vmatpush1.msra.mxu0 0.0
        %1884 = vmatprep.subr.mxu0 0.0
        %1885 = vmatpush1.msra.mxu0 0.0
        %1886 = vmatprep.mubr.f32.mxu0 0.0
        %1887 = vmatmul.mubr.f32.gmra.mrb[0].mxu0 %v1629
        %v1888 = vpop.f32.mrb[0].mxu0
        %v1889 = vadd.f32 %v1820, %v1888
        %v1890 = vpop.f32.mrb[0].mxu0
        %1891 = vmatprep.mubr.f32.mxu0 0.0
        %1892 = vmatmul.mubr.f32.gmra.mrb[0].mxu0 %v1632
        %v1893 = vpop.f32.mrb[0].mxu0
        %v1894 = vadd.f32 %v1820, %v1893
        %v1895 = vpop.f32.mrb[0].mxu0
        %1896 = vmatprep.mubr.f32.mxu0 0.0
        %1897 = vmatmul.mubr.f32.gmra.mrb[0].mxu0 %v1635
        %v1898 = vpop.f32.mrb[0].mxu0
        %v1899 = vadd.f32 %v1820, %v1898
        %v1900 = vpop.f32.mrb[0].mxu0
        %1901 = vmatprep.mubr.f32.mxu0 0.0
        %1902 = vmatmul.mubr.f32.gmra.mrb[0].mxu0 %v1638
        %v1903 = vpop.f32.mrb[0].mxu0
        %v1904 = vadd.f32 %v1820, %v1903
        %v1905 = vpop.f32.mrb[0].mxu0
        %1906 = vdwg.mxu0
        %v1908 = vsel %vm996, %v1707, 0
        %v1911 = vsel %vm996, %v1712, 0
        %v1914 = vsel %vm996, %v1717, 0
        %v1917 = vsel %vm996, %v1722, 0
        %v1920 = vsel %vm996, %v1798, 0
        %v1923 = vsel %vm996, %v1803, 0
        %v1926 = vsel %vm996, %v1808, 0
        %v1929 = vsel %vm996, %v1813, 0
        %1931 = vmatprep.subr.mxu0 0.0
        %1932 = vmatpush1.xpose.msra.mxu0 %v1920
        %1933 = vmatprep.subr.mxu0 0.0
        %1934 = vmatpush1.xpose.msra.mxu0 %v1923
        %1935 = vmatprep.subr.mxu0 0.0
        %1936 = vmatpush1.xpose.msra.mxu0 %v1926
        %1937 = vmatprep.subr.mxu0 0.0
        %1938 = vmatpush1.xpose.msra.mxu0 %v1929
        %1939 = vmatprep.subr.mxu0 0.0
        %1940 = vmatpush1.xpose.msra.mxu0 0.0
        %1941 = vmatprep.subr.mxu0 0.0
        %1942 = vmatpush1.xpose.msra.mxu0 0.0
        %1943 = vmatprep.subr.mxu0 0.0
        %1944 = vmatpush1.xpose.msra.mxu0 0.0
        %1945 = vmatprep.subr.mxu0 0.0
        %1946 = vmatpush1.xpose.msra.mxu0 0.0
        %1947 = vmatprep.subr.mxu0 0.0
        %1948 = vmatpush1.xpose.msra.mxu0 0.0
        %1949 = vmatprep.subr.mxu0 0.0
        %1950 = vmatpush1.xpose.msra.mxu0 0.0
        %1951 = vmatprep.subr.mxu0 0.0
        %1952 = vmatpush1.xpose.msra.mxu0 0.0
        %1953 = vmatprep.subr.mxu0 0.0
        %1954 = vmatpush1.xpose.msra.mxu0 0.0
        %1955 = vmatprep.subr.mxu0 0.0
        %1956 = vmatpush1.xpose.msra.mxu0 0.0
        %1957 = vmatprep.subr.mxu0 0.0
        %1958 = vmatpush1.xpose.msra.mxu0 0.0
        %1959 = vmatprep.subr.mxu0 0.0
        %1960 = vmatpush1.xpose.msra.mxu0 0.0
        %1961 = vmatprep.subr.mxu0 0.0
        %1962 = vmatpush1.xpose.msra.mxu0 0.0
        %1963 = vmatprep.subr.mxu0 0.0
        %1964 = vmatpush1.xpose.msra.mxu0 0.0
        %1965 = vmatprep.subr.mxu0 0.0
        %1966 = vmatpush1.xpose.msra.mxu0 0.0
        %1967 = vmatprep.subr.mxu0 0.0
        %1968 = vmatpush1.xpose.msra.mxu0 0.0
        %1969 = vmatprep.subr.mxu0 0.0
        %1970 = vmatpush1.xpose.msra.mxu0 0.0
        %1971 = vmatprep.subr.mxu0 0.0
        %1972 = vmatpush1.xpose.msra.mxu0 0.0
        %1973 = vmatprep.subr.mxu0 0.0
        %1974 = vmatpush1.xpose.msra.mxu0 0.0
        %1975 = vmatprep.subr.mxu0 0.0
        %1976 = vmatpush1.xpose.msra.mxu0 0.0
        %1977 = vmatprep.subr.mxu0 0.0
        %1978 = vmatpush1.xpose.msra.mxu0 0.0
        %1979 = vmatprep.subr.mxu0 0.0
        %1980 = vmatpush1.xpose.msra.mxu0 0.0
        %1981 = vmatprep.subr.mxu0 0.0
        %1982 = vmatpush1.xpose.msra.mxu0 0.0
        %1983 = vmatprep.subr.mxu0 0.0
        %1984 = vmatpush1.xpose.msra.mxu0 0.0
        %1985 = vmatprep.subr.mxu0 0.0
        %1986 = vmatpush1.xpose.msra.mxu0 0.0
        %1987 = vmatprep.subr.mxu0 0.0
        %1988 = vmatpush1.xpose.msra.mxu0 0.0
        %1989 = vmatprep.subr.mxu0 0.0
        %1990 = vmatpush1.xpose.msra.mxu0 0.0
        %1991 = vmatprep.subr.mxu0 0.0
        %1992 = vmatpush1.xpose.msra.mxu0 0.0
        %1993 = vmatprep.subr.mxu0 0.0
        %1994 = vmatpush1.xpose.msra.mxu0 0.0
        %1995 = vmatprep.mubr.f32.mxu0 0.0
        %1996 = vmatmul.mubr.f32.gmra.mrb[0].mxu0 %v1908
        %v1997 = vpop.f32.mrb[0].mxu0
        %v1998 = vadd.f32 0.0, %v1997
        %v1999 = vpop.f32.mrb[0].mxu0
        %2000 = vmatprep.mubr.f32.mxu0 0.0
        %2001 = vmatmul.mubr.f32.gmra.mrb[0].mxu0 %v1911
        %v2002 = vpop.f32.mrb[0].mxu0
        %v2003 = vadd.f32 0.0, %v2002
        %v2004 = vpop.f32.mrb[0].mxu0
        %2005 = vmatprep.mubr.f32.mxu0 0.0
        %2006 = vmatmul.mubr.f32.gmra.mrb[0].mxu0 %v1914
        %v2007 = vpop.f32.mrb[0].mxu0
        %v2008 = vadd.f32 0.0, %v2007
        %v2009 = vpop.f32.mrb[0].mxu0
        %2010 = vmatprep.mubr.f32.mxu0 0.0
        %2011 = vmatmul.mubr.f32.gmra.mrb[0].mxu0 %v1917
        %v2012 = vpop.f32.mrb[0].mxu0
        %v2013 = vadd.f32 0.0, %v2012
        %v2014 = vpop.f32.mrb[0].mxu0
        %2015 = vdwg.mxu0
        %v2016 = vsel %vm996, %v1998, -inf
        %2017 = vmax.xlane.f32.xlu0 %v2016
        %v2018 = vpop.xlane.xlu0 %2017
        %v2019 = vsel %vm996, %v2003, -inf
        %2020 = vmax.xlane.f32.xlu0 %v2019
        %v2021 = vpop.xlane.xlu0 %2020
        %v2022 = vsel %vm996, %v2008, -inf
        %2023 = vmax.xlane.f32.xlu0 %v2022
        %v2024 = vpop.xlane.xlu0 %2023
        %v2025 = vsel %vm996, %v2013, -inf
        %2026 = vmax.xlane.f32.xlu0 %v2025
        %v2027 = vpop.xlane.xlu0 %2026
        %v2028 = vsub.f32 %v1998, %v2018
        %v2029 = vsub.f32 %v2003, %v2021
        %v2030 = vsub.f32 %v2008, %v2024
        %v2031 = vsub.f32 %v2013, %v2027
        %v2032 = vmul.f32 %v2028, 1.442695
        %v2033 = vpow.pop %v2032
        %v2034 = vmul.f32 %v2029, 1.442695
        %v2035 = vpow.pop %v2034
        %v2036 = vmul.f32 %v2030, 1.442695
        %v2037 = vpow.pop %v2036
        %v2038 = vmul.f32 %v2031, 1.442695
        %v2039 = vpow.pop %v2038
        %v2040 = vsel %vm996, %v2033, 0.0
        %2041 = vadd.xlane.f32.xlu0 %v2040
        %v2042 = vpop.xlane.xlu0 %2041
        %v2043 = vsel %vm996, %v2035, 0.0
        %2044 = vadd.xlane.f32.xlu0 %v2043
        %v2045 = vpop.xlane.xlu0 %2044
        %v2046 = vsel %vm996, %v2037, 0.0
        %2047 = vadd.xlane.f32.xlu0 %v2046
        %v2048 = vpop.xlane.xlu0 %2047
        %v2049 = vsel %vm996, %v2039, 0.0
        %2050 = vadd.xlane.f32.xlu0 %v2049
        %v2051 = vpop.xlane.xlu0 %2050
        %v2052 = vrcp.pop %v2042
        %v2053 = vrcp.pop %v2045
        %v2054 = vrcp.pop %v2048
        %v2055 = vrcp.pop %v2051
        %v2056 = vmul.f32 %v2042, %v2052
        %v2057 = vmul.f32 %v2045, %v2053
        %v2058 = vmul.f32 %v2048, %v2054
        %v2059 = vmul.f32 %v2051, %v2055
        %v2060 = vsub.f32 2.0, %v2056
        %v2061 = vsub.f32 2.0, %v2057
        %v2062 = vsub.f32 2.0, %v2058
        %v2063 = vsub.f32 2.0, %v2059
        %v2064 = vmul.f32 %v2052, %v2060
        %v2065 = vmul.f32 %v2053, %v2061
        %v2066 = vmul.f32 %v2054, %v2062
        %v2067 = vmul.f32 %v2055, %v2063
        %v2068 = vmul.f32 %v2033, %v2064
        %v2069 = vmul.f32 %v2035, %v2065
        %v2070 = vmul.f32 %v2037, %v2066
        %v2071 = vmul.f32 %v2039, %v2067
        %v2073 = vsel %vm996, %v2068, 0
        %v2076 = vsel %vm996, %v2069, 0
        %v2079 = vsel %vm996, %v2070, 0
        %v2082 = vsel %vm996, %v2071, 0
        %2084 = vmatprep.subr.mxu0 0.0
        %2085 = vmatpush1.msra.mxu0 %v1889
        %2086 = vmatprep.subr.mxu0 0.0
        %2087 = vmatpush1.msra.mxu0 %v1894
        %2088 = vmatprep.subr.mxu0 0.0
        %2089 = vmatpush1.msra.mxu0 %v1899
        %2090 = vmatprep.subr.mxu0 0.0
        %2091 = vmatpush1.msra.mxu0 %v1904
        %2092 = vmatprep.subr.mxu0 0.0
        %2093 = vmatpush1.msra.mxu0 0.0
        %2094 = vmatprep.subr.mxu0 0.0
        %2095 = vmatpush1.msra.mxu0 0.0
        %2096 = vmatprep.subr.mxu0 0.0
        %2097 = vmatpush1.msra.mxu0 0.0
        %2098 = vmatprep.subr.mxu0 0.0
        %2099 = vmatpush1.msra.mxu0 0.0
        %2100 = vmatprep.subr.mxu0 0.0
        %2101 = vmatpush1.msra.mxu0 0.0
        %2102 = vmatprep.subr.mxu0 0.0
        %2103 = vmatpush1.msra.mxu0 0.0
        %2104 = vmatprep.subr.mxu0 0.0
        %2105 = vmatpush1.msra.mxu0 0.0
        %2106 = vmatprep.subr.mxu0 0.0
        %2107 = vmatpush1.msra.mxu0 0.0
        %2108 = vmatprep.subr.mxu0 0.0
        %2109 = vmatpush1.msra.mxu0 0.0
        %2110 = vmatprep.subr.mxu0 0.0
        %2111 = vmatpush1.msra.mxu0 0.0
        %2112 = vmatprep.subr.mxu0 0.0
        %2113 = vmatpush1.msra.mxu0 0.0
        %2114 = vmatprep.subr.mxu0 0.0
        %2115 = vmatpush1.msra.mxu0 0.0
        %2116 = vmatprep.subr.mxu0 0.0
        %2117 = vmatpush1.msra.mxu0 0.0
        %2118 = vmatprep.subr.mxu0 0.0
        %2119 = vmatpush1.msra.mxu0 0.0
        %2120 = vmatprep.subr.mxu0 0.0
        %2121 = vmatpush1.msra.mxu0 0.0
        %2122 = vmatprep.subr.mxu0 0.0
        %2123 = vmatpush1.msra.mxu0 0.0
        %2124 = vmatprep.subr.mxu0 0.0
        %2125 = vmatpush1.msra.mxu0 0.0
        %2126 = vmatprep.subr.mxu0 0.0
        %2127 = vmatpush1.msra.mxu0 0.0
        %2128 = vmatprep.subr.mxu0 0.0
        %2129 = vmatpush1.msra.mxu0 0.0
        %2130 = vmatprep.subr.mxu0 0.0
        %2131 = vmatpush1.msra.mxu0 0.0
        %2132 = vmatprep.subr.mxu0 0.0
        %2133 = vmatpush1.msra.mxu0 0.0
        %2134 = vmatprep.subr.mxu0 0.0
        %2135 = vmatpush1.msra.mxu0 0.0
        %2136 = vmatprep.subr.mxu0 0.0
        %2137 = vmatpush1.msra.mxu0 0.0
        %2138 = vmatprep.subr.mxu0 0.0
        %2139 = vmatpush1.msra.mxu0 0.0
        %2140 = vmatprep.subr.mxu0 0.0
        %2141 = vmatpush1.msra.mxu0 0.0
        %2142 = vmatprep.subr.mxu0 0.0
        %2143 = vmatpush1.msra.mxu0 0.0
        %2144 = vmatprep.subr.mxu0 0.0
        %2145 = vmatpush1.msra.mxu0 0.0
        %2146 = vmatprep.subr.mxu0 0.0
        %2147 = vmatpush1.msra.mxu0 0.0
        %2148 = vmatprep.mubr.f32.mxu0 0.0
        %2149 = vmatmul.mubr.f32.gmra.mrb[0].mxu0 %v2073
        %v2150 = vpop.f32.mrb[0].mxu0
        %v2151 = vadd.f32 0.0, %v2150
        %v2152 = vpop.f32.mrb[0].mxu0
        %2153 = vmatprep.mubr.f32.mxu0 0.0
        %2154 = vmatmul.mubr.f32.gmra.mrb[0].mxu0 %v2076
        %v2155 = vpop.f32.mrb[0].mxu0
        %v2156 = vadd.f32 0.0, %v2155
        %v2157 = vpop.f32.mrb[0].mxu0
        %2158 = vmatprep.mubr.f32.mxu0 0.0
        %2159 = vmatmul.mubr.f32.gmra.mrb[0].mxu0 %v2079
        %v2160 = vpop.f32.mrb[0].mxu0
        %v2161 = vadd.f32 0.0, %v2160
        %v2162 = vpop.f32.mrb[0].mxu0
        %2163 = vmatprep.mubr.f32.mxu0 0.0
        %2164 = vmatmul.mubr.f32.gmra.mrb[0].mxu0 %v2082
        %v2165 = vpop.f32.mrb[0].mxu0
        %v2166 = vadd.f32 0.0, %v2165
        %v2167 = vpop.f32.mrb[0].mxu0
        %2168 = vdwg.mxu0
        %v2170 = vlaneseq
        %v2171 = vshrl.u32 %v2170, 7
        %v2172 = vsub.s32 0, %v2171
        %v2173 = vrot.slane %v1621, %v2172
        %v2176 = vsel %vm996, %v2151, 0
        %v2179 = vsel %vm996, %v2156, 0
        %v2182 = vsel %vm996, %v2161, 0
        %v2185 = vsel %vm996, %v2166, 0
        %2187 = vmatprep.subr.mxu0 0.0
        %2188 = vmatpush1.msra.mxu0 %v1617
        %2189 = vmatprep.subr.mxu0 0.0
        %2190 = vmatpush1.msra.mxu0 %v1618
        %2191 = vmatprep.subr.mxu0 0.0
        %2192 = vmatpush1.msra.mxu0 %v1619
        %2193 = vmatprep.subr.mxu0 0.0
        %2194 = vmatpush1.msra.mxu0 %v1620
        %2195 = vmatprep.subr.mxu0 0.0
        %2196 = vmatpush1.msra.mxu0 0.0
        %2197 = vmatprep.subr.mxu0 0.0
        %2198 = vmatpush1.msra.mxu0 0.0
        %2199 = vmatprep.subr.mxu0 0.0
        %2200 = vmatpush1.msra.mxu0 0.0
        %2201 = vmatprep.subr.mxu0 0.0
        %2202 = vmatpush1.msra.mxu0 0.0
        %2203 = vmatprep.subr.mxu0 0.0
        %2204 = vmatpush1.msra.mxu0 0.0
        %2205 = vmatprep.subr.mxu0 0.0
        %2206 = vmatpush1.msra.mxu0 0.0
        %2207 = vmatprep.subr.mxu0 0.0
        %2208 = vmatpush1.msra.mxu0 0.0
        %2209 = vmatprep.subr.mxu0 0.0
        %2210 = vmatpush1.msra.mxu0 0.0
        %2211 = vmatprep.subr.mxu0 0.0
        %2212 = vmatpush1.msra.mxu0 0.0
        %2213 = vmatprep.subr.mxu0 0.0
        %2214 = vmatpush1.msra.mxu0 0.0
        %2215 = vmatprep.subr.mxu0 0.0
        %2216 = vmatpush1.msra.mxu0 0.0
        %2217 = vmatprep.subr.mxu0 0.0
        %2218 = vmatpush1.msra.mxu0 0.0
        %2219 = vmatprep.subr.mxu0 0.0
        %2220 = vmatpush1.msra.mxu0 0.0
        %2221 = vmatprep.subr.mxu0 0.0
        %2222 = vmatpush1.msra.mxu0 0.0
        %2223 = vmatprep.subr.mxu0 0.0
        %2224 = vmatpush1.msra.mxu0 0.0
        %2225 = vmatprep.subr.mxu0 0.0
        %2226 = vmatpush1.msra.mxu0 0.0
        %2227 = vmatprep.subr.mxu0 0.0
        %2228 = vmatpush1.msra.mxu0 0.0
        %2229 = vmatprep.subr.mxu0 0.0
        %2230 = vmatpush1.msra.mxu0 0.0
        %2231 = vmatprep.subr.mxu0 0.0
        %2232 = vmatpush1.msra.mxu0 0.0
        %2233 = vmatprep.subr.mxu0 0.0
        %2234 = vmatpush1.msra.mxu0 0.0
        %2235 = vmatprep.subr.mxu0 0.0
        %2236 = vmatpush1.msra.mxu0 0.0
        %2237 = vmatprep.subr.mxu0 0.0
        %2238 = vmatpush1.msra.mxu0 0.0
        %2239 = vmatprep.subr.mxu0 0.0
        %2240 = vmatpush1.msra.mxu0 0.0
        %2241 = vmatprep.subr.mxu0 0.0
        %2242 = vmatpush1.msra.mxu0 0.0
        %2243 = vmatprep.subr.mxu0 0.0
        %2244 = vmatpush1.msra.mxu0 0.0
        %2245 = vmatprep.subr.mxu0 0.0
        %2246 = vmatpush1.msra.mxu0 0.0
        %2247 = vmatprep.subr.mxu0 0.0
        %2248 = vmatpush1.msra.mxu0 0.0
        %2249 = vmatprep.subr.mxu0 0.0
        %2250 = vmatpush1.msra.mxu0 0.0
        %2251 = vmatprep.mubr.f32.mxu0 0.0
        %2252 = vmatmul.mubr.f32.gmra.mrb[0].mxu0 %v2176
        %v2253 = vpop.f32.mrb[0].mxu0
        %v2254 = vadd.f32 %v2173, %v2253
        %v2255 = vpop.f32.mrb[0].mxu0
        %2256 = vmatprep.mubr.f32.mxu0 0.0
        %2257 = vmatmul.mubr.f32.gmra.mrb[0].mxu0 %v2179
        %v2258 = vpop.f32.mrb[0].mxu0
        %v2259 = vadd.f32 %v2173, %v2258
        %v2260 = vpop.f32.mrb[0].mxu0
        %2261 = vmatprep.mubr.f32.mxu0 0.0
        %2262 = vmatmul.mubr.f32.gmra.mrb[0].mxu0 %v2182
        %v2263 = vpop.f32.mrb[0].mxu0
        %v2264 = vadd.f32 %v2173, %v2263
        %v2265 = vpop.f32.mrb[0].mxu0
        %2266 = vmatprep.mubr.f32.mxu0 0.0
        %2267 = vmatmul.mubr.f32.gmra.mrb[0].mxu0 %v2185
        %v2268 = vpop.f32.mrb[0].mxu0
        %v2269 = vadd.f32 %v2173, %v2268
        %v2270 = vpop.f32.mrb[0].mxu0
        %2271 = vdwg.mxu0
        %2272 = vst.msk [vmem:[%s885] sm:$0xff] %vm996, %v2254
        %2273 = vst.msk [vmem:[%s885 + $0x8] sm:$0xff] %vm996, %v2259
        %2274 = vst.msk [vmem:[%s885 + $0x10] sm:$0xff] %vm996, %v2264
        %2275 = vst.msk [vmem:[%s885 + $0x18] sm:$0xff] %vm996, %v2269
        %s2276 = sand.u32 %s500, 1
        %s2277 = scalar_lea.sflag [#allocation4], %s2276
        %s2278 = sand.u32 %s500, 1
        %s2279 = smul.addr %s2278, 32
        %s2280 = scalar_lea.vmem [#allocation29], %s2279
        // Predicated region
        $region173: #{tpu_custom_call.1} parent=103 // pred_check
          %p2281 = pneg %p510
        $region174: #{tpu_custom_call.1} parent=103 // pred_check_branch
          %2283 = sbr.rel (%p2281) target = $region176
        $region175: #{tpu_custom_call.1} parent=103 // pred_region
          %s2285 = ssub.s32 512, 512
          %2286 = vsyncadd %s2277, %s2285
          %s2287 = smul.addr %s46, 4
          %s2288 = smul.addr %s2287, 128
          %s2289 = scalar_lea.hbm %s21, %s2288
          %s2290 = sshll.u32 %s2280, 4
          %s2291 = int_to_ptr.vmem [resolvable:$true] %s2290
          %2296 = dma.vmem_to_hbm [thread:$0]  %s2291, 512, %s2289, %s2277, 128, 128, 8
        $region176: #{tpu_custom_call.1} parent=103 // pred_fallthru
          _
      $region104: #{tpu_custom_call.1} parent=5 // pred_fallthru
        _
      %p2297 = scmp.le.s32.totalorder 2, %s41
      // Predicated region
      $region177: #{tpu_custom_call.1} parent=5 // pred_check
        %p2298 = pneg %p2297
      $region178: #{tpu_custom_call.1} parent=5 // pred_check_branch
        %2300 = sbr.rel (%p2298) target = $region180
      $region179: #{tpu_custom_call.1} parent=5 // pred_region
        %s2301 = ssub.s32 %s41, 2
        // Predicated region
        $region181: #{tpu_custom_call.1} parent=179 // pred_check
          %p2302 = pneg %p516
        $region182: #{tpu_custom_call.1} parent=179 // pred_check_branch
          %2304 = sbr.rel (%p2302) target = $region184
        $region183: #{tpu_custom_call.1} parent=179 // pred_region
          %s2305 = sand.u32 %s501, 1
          %s2306 = scalar_lea.sflag [#allocation4], %s2305
          %s2307 = sand.u32 %s501, 1
          %s2308 = smul.addr %s2307, 32
          %s2309 = scalar_lea.vmem [#allocation29], %s2308
          %2310 = dma.done %s2306, 512
        $region184: #{tpu_custom_call.1} parent=179 // pred_fallthru
          _
      $region180: #{tpu_custom_call.1} parent=5 // pred_fallthru
        _
    $region6: #{tpu_custom_call.1} parent=1 // loop_footer
      %s45 = sadd.s32 1, %s41
    $region7: #{tpu_custom_call.1} parent=1 // loop_footer_branch
      %40 = sbr.rel target = $region3
    $region8: #{tpu_custom_call.1} parent=1 // loop_exit
      _
    %2311 = vsyncpa [#allocation3], 1
    %s2312 = scalar_lea.sflag [#allocation3], 1
    %2313 = vsyncpa %s2312, 1
    %2314 = vsyncpa [#allocation6], 1
    %2315 = vsyncpa [#allocation9], 1
    %2316 = vsyncpa [#allocation12], 1
    %2317 = vsyncpa [#allocation15], 1
    %2318 = vsyncpa [#allocation18], 1
    %2319 = vsyncpa [#allocation21], 1
    %2320 = vsyncpa [#allocation24], 1
    %2321 = vsyncpa [#allocation27], 1
    %2322 = vsyncpa [#allocation4], 1
    %s2323 = scalar_lea.sflag [#allocation4], 1
    %2324 = vsyncpa %s2323, 1

</llo_original>
